<compile_context>
chip_gen: v7x
topology: tpu7x:2x2x1
jax: 0.10.0
libtpu: 0.0.40
codegen_flags: <defaults>
</compile_context>

<pallas_src>
import functools

import jax
import jax.numpy as jnp
from jax.experimental import pallas as pl
from jax.experimental.pallas import tpu as pltpu

BN_EPS = 1e-5


# ---------------------------------------------------------------------------
# Row-Toeplitz weight construction (runs once per layer in XLA, tiny).
# ---------------------------------------------------------------------------
def toeplitz_weights(w_hwio, W):
    """Build KH matrices T[ky] of shape (W*Cin, W*Cout) such that for a
    channel-interleaved row x (length W*Cin),  (x @ T[ky]) is that row's
    contribution (vertical tap ky) to the conv output row (length W*Cout),
    with the horizontal "same" zero padding already folded in."""
    KH, KW, Cin, Cout = w_hwio.shape
    pw = (KW - 1) // 2
    # S[kx][win, wout] = 1  iff  win == wout + kx - pw  (in-range taps only).
    shifts = jnp.stack(
        [jnp.eye(W, W, k=pw - kx, dtype=w_hwio.dtype) for kx in range(KW)])  # (KW, W, W)
    T = jnp.einsum('xpq,yxio->ypiqo', shifts, w_hwio)   # (KH, W_in, Cin, W_out, Cout)
    return T.reshape(KH, W * Cin, W * Cout)


# ---------------------------------------------------------------------------
# Pallas kernel: (prev-BN affine) -> zero-pad rows -> conv (KH Toeplitz matmuls)
#                -> raw output + per-image BN partial statistics.
# ---------------------------------------------------------------------------
def _affine_pad_conv_kernel(x_ref, scale_ref, shift_ref, w_ref, y_ref, stats_ref,
                            *, H, W, Cin, Cout, KH, matmul_dtype):
    ph = (KH - 1) // 2
    wc_in = W * Cin
    wc_out = W * Cout

    # Previous layer's BatchNorm affine, folded forward into this kernel.
    # Zero is the correct pad value in the normalized domain, so padding AFTER
    # the affine matches the reference semantics exactly.
    a = x_ref[0] * scale_ref[...] + shift_ref[...]          # (H, W*Cin) f32
    a = a.astype(matmul_dtype)

    # Vertical "same" padding: two zero row-bands, in-register (sublane concat).
    zrow = jnp.zeros((ph, wc_in), matmul_dtype)
    a_pad = jnp.concatenate([zrow, a, zrow], axis=0)         # (H + 2*ph, W*Cin)

    # KH row-Toeplitz matmuls, f32 accumulation.  Horizontal padding is already
    # inside w_ref, so the operand rows stay lane-dense and lane-aligned.
    acc = jnp.zeros((H, wc_out), jnp.float32)
    for ky in range(KH):                                     # static, unrolled
        acc = acc + jnp.dot(a_pad[ky:ky + H, :], w_ref[ky],
                            preferred_element_type=jnp.float32)

    # Raw conv output in the store layout (no reshape/relayout needed).
    y_ref[...] = acc.reshape(1, H, wc_out).astype(y_ref.dtype)

    # Per-image BN partials, kept lane-dense as (2, W*Cout); the tiny W / batch
    # reduction finishes in the XLA epilogue together with the scale/shift math.
    s1 = jnp.sum(acc, axis=0, keepdims=True)                 # (1, W*Cout)
    s2 = jnp.sum(acc * acc, axis=0, keepdims=True)           # (1, W*Cout)
    stats_ref[...] = jnp.concatenate([s1, s2], axis=0).reshape(1, 2, wc_out)


def conv_bn_layer(act, scale_row, shift_row, w_toep, H, W, Cin, Cout, KH,
                  matmul_dtype):
    """One fused (affine of previous BN) + conv layer over grid=(N,).

    act:        (N, H, W*Cin) f32, channel-interleaved, RAW previous conv output
    scale_row:  (1, W*Cin) f32  previous BN scale, tiled over W
    shift_row:  (1, W*Cin) f32  previous BN shift, tiled over W
    w_toep:     (KH, W*Cin, W*Cout) Toeplitz conv weights (matmul_dtype)
    returns     y_raw (N, H, W*Cout) f32, stats (N, 2, W*Cout) f32
    """
    N = act.shape[0]
    kernel = functools.partial(
        _affine_pad_conv_kernel, H=H, W=W, Cin=Cin, Cout=Cout, KH=KH,
        matmul_dtype=matmul_dtype)

    grid_spec = pltpu.PrefetchScalarGridSpec(
        num_scalar_prefetch=0,
        grid=(N,),
        in_specs=[
            pl.BlockSpec((1, H, W * Cin), lambda n: (n, 0, 0)),        # activation
            pl.BlockSpec((1, W * Cin), lambda n: (0, 0)),              # BN scale (resident)
            pl.BlockSpec((1, W * Cin), lambda n: (0, 0)),              # BN shift (resident)
            pl.BlockSpec((KH, W * Cin, W * Cout), lambda n: (0, 0, 0)),  # weights (resident)
        ],
        out_specs=(
            pl.BlockSpec((1, H, W * Cout), lambda n: (n, 0, 0)),
            pl.BlockSpec((1, 2, W * Cout), lambda n: (n, 0, 0)),
        ),
    )

    return pl.pallas_call(
        kernel,
        out_shape=(
            jax.ShapeDtypeStruct((N, H, W * Cout), jnp.float32),
            jax.ShapeDtypeStruct((N, 2, W * Cout), jnp.float32),
        ),
        grid_spec=grid_spec,
        compiler_params=pltpu.CompilerParams(
            dimension_semantics=("parallel",),
            vmem_limit_bytes=32 * 1024 * 1024,
        ),
    )(act, scale_row, shift_row, w_toep)


# ---------------------------------------------------------------------------
# Conv_Block forward (NCHW in / NCHW out), equivalent to the PyTorch module.
# ---------------------------------------------------------------------------
def conv_block_forward(input1, input2, input3, params, matmul_dtype=jnp.bfloat16):
    x = jnp.concatenate([input1, input2, input3], axis=1)     # (N, 3c, H, W)
    x = jnp.transpose(x, (0, 2, 3, 1))                        # (N, H, W, 3c)
    N, H, W, C = x.shape
    act = x.reshape(N, H, W * C)                              # channel-interleaved

    # Identity affine for the first layer (its input is not BN-normalized).
    scale = jnp.ones((C,), jnp.float32)
    shift = jnp.zeros((C,), jnp.float32)

    for w_hwio, gamma, beta in params:
        KH, KW, Cin, Cout = w_hwio.shape
        assert Cin == C, (Cin, C)

        w_toep = toeplitz_weights(w_hwio, W).astype(matmul_dtype)
        scale_row = jnp.tile(scale, W).reshape(1, W * Cin)
        shift_row = jnp.tile(shift, W).reshape(1, W * Cin)

        y_raw, stats = conv_bn_layer(act, scale_row, shift_row, w_toep,
                                     H, W, Cin, Cout, KH, matmul_dtype)

        # Training-mode BatchNorm2d statistics (biased variance) from the
        # per-image lane-dense partials.  E[x^2]-E[x]^2 is fine at this size;
        # use shifted sums if this block is ever reused at large N*H*W.
        s = stats.reshape(N, 2, W, Cout).sum(axis=(0, 2))      # (2, Cout)
        cnt = float(N * H * W)
        mean = s[0] / cnt
        var = s[1] / cnt - mean * mean
        inv = jax.lax.rsqrt(var + BN_EPS)
        scale = inv * gamma
        shift = beta - mean * scale

        act = y_raw                                            # raw conv output only
        C = Cout

    # Last layer has no next conv to fold into: apply the final BN affine here.
    out = act * jnp.tile(scale, W) + jnp.tile(shift, W)
    out = out.reshape(N, H, W, C)
    return jnp.transpose(out, (0, 3, 1, 2))                    # back to NCHW


# ---------------------------------------------------------------------------
# Parameter init (weight_init equivalent) and plain-JAX reference.
# ---------------------------------------------------------------------------
def init_params(key, channels):
    """kaiming_normal (fan_in, relu) conv weights in HWIO; BN gamma=1, beta=0."""
    def kaiming(k, kh, kw, cin, cout):
        std = (2.0 / (cin * kh * kw)) ** 0.5
        return jax.random.normal(k, (kh, kw, cin, cout), jnp.float32) * std

    k1, k2, k3 = jax.random.split(key, 3)
    c = channels
    return [
        (kaiming(k1, 3, 3, 3 * c, c), jnp.ones((c,), jnp.float32), jnp.zeros((c,), jnp.float32)),
        (kaiming(k2, 5, 5, c, 2 * c), jnp.ones((2 * c,), jnp.float32), jnp.zeros((2 * c,), jnp.float32)),
        (kaiming(k3, 3, 3, 2 * c, c), jnp.ones((c,), jnp.float32), jnp.zeros((c,), jnp.float32)),
    ]


def ref_forward(input1, input2, input3, params):
    """Plain-JAX reference: concat + conv2d + training-mode BatchNorm2d."""
    x = jnp.concatenate([input1, input2, input3], axis=1)
    for w, g, b in params:
        kh = w.shape[0]
        pad = (kh - 1) // 2
        w_oihw = jnp.transpose(w, (3, 2, 0, 1))
        y = jax.lax.conv_general_dilated(
            x, w_oihw, window_strides=(1, 1),
            padding=[(pad, pad), (pad, pad)],
            dimension_numbers=('NCHW', 'OIHW', 'NCHW'))
        mean = jnp.mean(y, axis=(0, 2, 3), keepdims=True)
        var = jnp.mean((y - mean) ** 2, axis=(0, 2, 3), keepdims=True)
        x = ((y - mean) / jnp.sqrt(var + BN_EPS)) * g.reshape(1, -1, 1, 1) \
            + b.reshape(1, -1, 1, 1)
    return x


if __name__ == "__main__":
    key = jax.random.PRNGKey(0)
    kp, kx1, kx2, kx3 = jax.random.split(key, 4)

    channels = 4
    N, H, W = 2, 16, 16
    x1 = jax.random.normal(kx1, (N, channels, H, W), jnp.float32)
    x2 = jax.random.normal(kx2, (N, channels, H, W), jnp.float32)
    x3 = jax.random.normal(kx3, (N, channels, H, W), jnp.float32)
    params = init_params(kp, channels)

    ref = ref_forward(x1, x2, x3, params)

    # f32 MXU path: tight correctness check.
    fwd_f32 = jax.jit(functools.partial(conv_block_forward, matmul_dtype=jnp.float32))
    out_f32 = jax.block_until_ready(fwd_f32(x1, x2, x3, params))
    assert out_f32.shape == (N, channels, H, W), out_f32.shape
    err_f32 = float(jnp.max(jnp.abs(out_f32 - ref)))
    assert jnp.allclose(out_f32, ref, atol=1e-3, rtol=1e-3), err_f32

    # bf16 MXU path (default, per perf review): looser tolerance for bf16 rounding.
    fwd_bf16 = jax.jit(conv_block_forward)
    out_bf16 = jax.block_until_ready(fwd_bf16(x1, x2, x3, params))
    assert out_bf16.shape == (N, channels, H, W), out_bf16.shape
    err_bf16 = float(jnp.max(jnp.abs(out_bf16 - ref)))
    assert jnp.allclose(out_bf16, ref, atol=5e-2, rtol=5e-2), err_bf16

    print("KERNEL_OK")
</pallas_src>

<mosaic_0001>
module attributes {stable_mosaic.version = 11 : i64} {
  func.func @_affine_pad_conv_kernel(%arg0: i32, %arg1: memref<1x16x192xf32, #tpu.memory_space<vmem>>, %arg2: memref<1x192xf32, #tpu.memory_space<vmem>>, %arg3: memref<1x192xf32, #tpu.memory_space<vmem>>, %arg4: memref<3x192x64xf32, #tpu.memory_space<vmem>>, %arg5: memref<1x16x64xf32, #tpu.memory_space<vmem>>, %arg6: memref<1x2x64xf32, #tpu.memory_space<vmem>>) attributes {dimension_semantics = [#tpu.dimension_semantics<parallel>], iteration_bounds = array<i64: 2>, scalar_prefetch = 0 : i64, scratch_operands = 0 : i64, tpu.core_type = #tpu.core_type<tc>, window_params = [{transform_indices = @transform_0, window_bounds = array<i64: 1, 16, 192>}, {pipeline_mode = #tpu.pipeline_mode<synchronous>, transform_indices = @transform_1, window_bounds = array<i64: 1, 192>}, {pipeline_mode = #tpu.pipeline_mode<synchronous>, transform_indices = @transform_2, window_bounds = array<i64: 1, 192>}, {pipeline_mode = #tpu.pipeline_mode<synchronous>, transform_indices = @transform_3, window_bounds = array<i64: 3, 192, 64>}, {transform_indices = @transform_4, window_bounds = array<i64: 1, 16, 64>}, {transform_indices = @transform_5, window_bounds = array<i64: 1, 2, 64>}]} {
    %c0 = arith.constant 0 : index
    %c0_0 = arith.constant 0 : index
    %c0_1 = arith.constant 0 : index
    %0 = vector.load %arg1[%c0, %c0_0, %c0_1] : memref<1x16x192xf32, #tpu.memory_space<vmem>>, vector<1x16x192xf32>
    %1 = vector.shape_cast %0 : vector<1x16x192xf32> to vector<16x192xf32>
    %c0_2 = arith.constant 0 : index
    %c0_3 = arith.constant 0 : index
    %2 = vector.load %arg2[%c0_2, %c0_3] : memref<1x192xf32, #tpu.memory_space<vmem>>, vector<1x192xf32>
    %3 = vector.broadcast %2 : vector<1x192xf32> to vector<16x192xf32>
    %4 = arith.mulf %1, %3 : vector<16x192xf32>
    %c0_4 = arith.constant 0 : index
    %c0_5 = arith.constant 0 : index
    %5 = vector.load %arg3[%c0_4, %c0_5] : memref<1x192xf32, #tpu.memory_space<vmem>>, vector<1x192xf32>
    %6 = vector.broadcast %5 : vector<1x192xf32> to vector<16x192xf32>
    %7 = arith.addf %4, %6 : vector<16x192xf32>
    %cst = arith.constant 0.000000e+00 : f32
    %8 = vector.broadcast %cst : f32 to vector<1x192xf32>
    %9 = tpu.concatenate %8, %7, %8 in 0 : vector<1x192xf32>, vector<16x192xf32>, vector<1x192xf32> -> vector<18x192xf32>
    %cst_6 = arith.constant 0.000000e+00 : f32
    %10 = vector.broadcast %cst_6 : f32 to vector<16x64xf32>
    %11 = vector.extract_strided_slice %9 {offsets = [0, 0], sizes = [16, 192], strides = [1, 1]} : vector<18x192xf32> to vector<16x192xf32>
    %c0_7 = arith.constant 0 : index
    %c0_8 = arith.constant 0 : index
    %c0_9 = arith.constant 0 : index
    %12 = vector.load %arg4[%c0_7, %c0_8, %c0_9] : memref<3x192x64xf32, #tpu.memory_space<vmem>>, vector<1x192x64xf32>
    %13 = vector.shape_cast %12 : vector<1x192x64xf32> to vector<192x64xf32>
    %cst_10 = arith.constant dense<0.000000e+00> : vector<16x64xf32>
    %14 = tpu.matmul %11, %13, %cst_10 {dimension_numbers = #tpu.dot_dimension_numbers<[1], [0], [0], [1], [0, 0, 1, 1], [], []>} : vector<16x192xf32>, vector<192x64xf32>, vector<16x64xf32> -> vector<16x64xf32>
    %15 = arith.addf %10, %14 : vector<16x64xf32>
    %16 = vector.extract_strided_slice %9 {offsets = [1, 0], sizes = [16, 192], strides = [1, 1]} : vector<18x192xf32> to vector<16x192xf32>
    %c1 = arith.constant 1 : index
    %c0_11 = arith.constant 0 : index
    %c0_12 = arith.constant 0 : index
    %17 = vector.load %arg4[%c1, %c0_11, %c0_12] : memref<3x192x64xf32, #tpu.memory_space<vmem>>, vector<1x192x64xf32>
    %18 = vector.shape_cast %17 : vector<1x192x64xf32> to vector<192x64xf32>
    %cst_13 = arith.constant dense<0.000000e+00> : vector<16x64xf32>
    %19 = tpu.matmul %16, %18, %cst_13 {dimension_numbers = #tpu.dot_dimension_numbers<[1], [0], [0], [1], [0, 0, 1, 1], [], []>} : vector<16x192xf32>, vector<192x64xf32>, vector<16x64xf32> -> vector<16x64xf32>
    %20 = arith.addf %15, %19 : vector<16x64xf32>
    %21 = vector.extract_strided_slice %9 {offsets = [2, 0], sizes = [16, 192], strides = [1, 1]} : vector<18x192xf32> to vector<16x192xf32>
    %c2 = arith.constant 2 : index
    %c0_14 = arith.constant 0 : index
    %c0_15 = arith.constant 0 : index
    %22 = vector.load %arg4[%c2, %c0_14, %c0_15] : memref<3x192x64xf32, #tpu.memory_space<vmem>>, vector<1x192x64xf32>
    %23 = vector.shape_cast %22 : vector<1x192x64xf32> to vector<192x64xf32>
    %cst_16 = arith.constant dense<0.000000e+00> : vector<16x64xf32>
    %24 = tpu.matmul %21, %23, %cst_16 {dimension_numbers = #tpu.dot_dimension_numbers<[1], [0], [0], [1], [0, 0, 1, 1], [], []>} : vector<16x192xf32>, vector<192x64xf32>, vector<16x64xf32> -> vector<16x64xf32>
    %25 = arith.addf %20, %24 : vector<16x64xf32>
    %26 = vector.shape_cast %25 : vector<16x64xf32> to vector<1x16x64xf32>
    %c0_17 = arith.constant 0 : index
    %c0_18 = arith.constant 0 : index
    %c0_19 = arith.constant 0 : index
    %27 = vector.load %arg5[%c0_17, %c0_18, %c0_19] : memref<1x16x64xf32, #tpu.memory_space<vmem>>, vector<1x16x64xf32>
    tpu.vector_store %arg5[%c0_17, %c0_18, %c0_19], %26 {strides = array<i32>} : memref<1x16x64xf32, #tpu.memory_space<vmem>>, vector<1x16x64xf32>,
    %cst_20 = arith.constant dense<0.000000e+00> : vector<64xf32>
    %28 = vector.multi_reduction <add>, %25, %cst_20 [0] : vector<16x64xf32> to vector<64xf32>
    %29 = vector.shape_cast %28 : vector<64xf32> to vector<1x64xf32>
    %30 = arith.mulf %25, %25 : vector<16x64xf32>
    %cst_21 = arith.constant dense<0.000000e+00> : vector<64xf32>
    %31 = vector.multi_reduction <add>, %30, %cst_21 [0] : vector<16x64xf32> to vector<64xf32>
    %32 = vector.shape_cast %31 : vector<64xf32> to vector<1x64xf32>
    %33 = tpu.concatenate %29, %32 in 0 : vector<1x64xf32>, vector<1x64xf32> -> vector<2x64xf32>
    %34 = vector.shape_cast %33 : vector<2x64xf32> to vector<1x2x64xf32>
    %c0_22 = arith.constant 0 : index
    %c0_23 = arith.constant 0 : index
    %c0_24 = arith.constant 0 : index
    %35 = vector.load %arg6[%c0_22, %c0_23, %c0_24] : memref<1x2x64xf32, #tpu.memory_space<vmem>>, vector<1x2x64xf32>
    tpu.vector_store %arg6[%c0_22, %c0_23, %c0_24], %34 {strides = array<i32>} : memref<1x2x64xf32, #tpu.memory_space<vmem>>, vector<1x2x64xf32>,
    return
  }
  func.func @transform_0(%arg0: i32) -> (i32, i32, i32) {
    %c0_i32 = arith.constant 0 : i32
    %c0_i32_0 = arith.constant 0 : i32
    %c0_i32_1 = arith.constant 0 : i32
    return %arg0, %c0_i32, %c0_i32_0 : i32, i32, i32
  }
  func.func @transform_1(%arg0: i32) -> (i32, i32) {
    %c0_i32 = arith.constant 0 : i32
    %c0_i32_0 = arith.constant 0 : i32
    %c0_i32_1 = arith.constant 0 : i32
    return %c0_i32, %c0_i32_0 : i32, i32
  }
  func.func @transform_2(%arg0: i32) -> (i32, i32) {
    %c0_i32 = arith.constant 0 : i32
    %c0_i32_0 = arith.constant 0 : i32
    %c0_i32_1 = arith.constant 0 : i32
    return %c0_i32, %c0_i32_0 : i32, i32
  }
  func.func @transform_3(%arg0: i32) -> (i32, i32, i32) {
    %c0_i32 = arith.constant 0 : i32
    %c0_i32_0 = arith.constant 0 : i32
    %c0_i32_1 = arith.constant 0 : i32
    %c0_i32_2 = arith.constant 0 : i32
    return %c0_i32, %c0_i32_0, %c0_i32_1 : i32, i32, i32
  }
  func.func @transform_4(%arg0: i32) -> (i32, i32, i32) {
    %c0_i32 = arith.constant 0 : i32
    %c0_i32_0 = arith.constant 0 : i32
    %c0_i32_1 = arith.constant 0 : i32
    return %arg0, %c0_i32, %c0_i32_0 : i32, i32, i32
  }
  func.func @transform_5(%arg0: i32) -> (i32, i32, i32) {
    %c0_i32 = arith.constant 0 : i32
    %c0_i32_0 = arith.constant 0 : i32
    %c0_i32_1 = arith.constant 0 : i32
    return %arg0, %c0_i32, %c0_i32_0 : i32, i32, i32
  }
}

module attributes {stable_mosaic.version = 11 : i64} {
  func.func @_affine_pad_conv_kernel(%arg0: i32, %arg1: memref<1x16x64xf32, #tpu.memory_space<vmem>>, %arg2: memref<1x64xf32, #tpu.memory_space<vmem>>, %arg3: memref<1x64xf32, #tpu.memory_space<vmem>>, %arg4: memref<5x64x128xf32, #tpu.memory_space<vmem>>, %arg5: memref<1x16x128xf32, #tpu.memory_space<vmem>>, %arg6: memref<1x2x128xf32, #tpu.memory_space<vmem>>) attributes {dimension_semantics = [#tpu.dimension_semantics<parallel>], iteration_bounds = array<i64: 2>, scalar_prefetch = 0 : i64, scratch_operands = 0 : i64, tpu.core_type = #tpu.core_type<tc>, window_params = [{transform_indices = @transform_0, window_bounds = array<i64: 1, 16, 64>}, {pipeline_mode = #tpu.pipeline_mode<synchronous>, transform_indices = @transform_1, window_bounds = array<i64: 1, 64>}, {pipeline_mode = #tpu.pipeline_mode<synchronous>, transform_indices = @transform_2, window_bounds = array<i64: 1, 64>}, {pipeline_mode = #tpu.pipeline_mode<synchronous>, transform_indices = @transform_3, window_bounds = array<i64: 5, 64, 128>}, {transform_indices = @transform_4, window_bounds = array<i64: 1, 16, 128>}, {transform_indices = @transform_5, window_bounds = array<i64: 1, 2, 128>}]} {
    %c0 = arith.constant 0 : index
    %c0_0 = arith.constant 0 : index
    %c0_1 = arith.constant 0 : index
    %0 = vector.load %arg1[%c0, %c0_0, %c0_1] : memref<1x16x64xf32, #tpu.memory_space<vmem>>, vector<1x16x64xf32>
    %1 = vector.shape_cast %0 : vector<1x16x64xf32> to vector<16x64xf32>
    %c0_2 = arith.constant 0 : index
    %c0_3 = arith.constant 0 : index
    %2 = vector.load %arg2[%c0_2, %c0_3] : memref<1x64xf32, #tpu.memory_space<vmem>>, vector<1x64xf32>
    %3 = vector.broadcast %2 : vector<1x64xf32> to vector<16x64xf32>
    %4 = arith.mulf %1, %3 : vector<16x64xf32>
    %c0_4 = arith.constant 0 : index
    %c0_5 = arith.constant 0 : index
    %5 = vector.load %arg3[%c0_4, %c0_5] : memref<1x64xf32, #tpu.memory_space<vmem>>, vector<1x64xf32>
    %6 = vector.broadcast %5 : vector<1x64xf32> to vector<16x64xf32>
    %7 = arith.addf %4, %6 : vector<16x64xf32>
    %cst = arith.constant 0.000000e+00 : f32
    %8 = vector.broadcast %cst : f32 to vector<2x64xf32>
    %9 = tpu.concatenate %8, %7, %8 in 0 : vector<2x64xf32>, vector<16x64xf32>, vector<2x64xf32> -> vector<20x64xf32>
    %cst_6 = arith.constant 0.000000e+00 : f32
    %10 = vector.broadcast %cst_6 : f32 to vector<16x128xf32>
    %11 = vector.extract_strided_slice %9 {offsets = [0, 0], sizes = [16, 64], strides = [1, 1]} : vector<20x64xf32> to vector<16x64xf32>
    %c0_7 = arith.constant 0 : index
    %c0_8 = arith.constant 0 : index
    %c0_9 = arith.constant 0 : index
    %12 = vector.load %arg4[%c0_7, %c0_8, %c0_9] : memref<5x64x128xf32, #tpu.memory_space<vmem>>, vector<1x64x128xf32>
    %13 = vector.shape_cast %12 : vector<1x64x128xf32> to vector<64x128xf32>
    %cst_10 = arith.constant dense<0.000000e+00> : vector<16x128xf32>
    %14 = tpu.matmul %11, %13, %cst_10 {dimension_numbers = #tpu.dot_dimension_numbers<[1], [0], [0], [1], [0, 0, 1, 1], [], []>} : vector<16x64xf32>, vector<64x128xf32>, vector<16x128xf32> -> vector<16x128xf32>
    %15 = arith.addf %10, %14 : vector<16x128xf32>
    %16 = vector.extract_strided_slice %9 {offsets = [1, 0], sizes = [16, 64], strides = [1, 1]} : vector<20x64xf32> to vector<16x64xf32>
    %c1 = arith.constant 1 : index
    %c0_11 = arith.constant 0 : index
    %c0_12 = arith.constant 0 : index
    %17 = vector.load %arg4[%c1, %c0_11, %c0_12] : memref<5x64x128xf32, #tpu.memory_space<vmem>>, vector<1x64x128xf32>
    %18 = vector.shape_cast %17 : vector<1x64x128xf32> to vector<64x128xf32>
    %cst_13 = arith.constant dense<0.000000e+00> : vector<16x128xf32>
    %19 = tpu.matmul %16, %18, %cst_13 {dimension_numbers = #tpu.dot_dimension_numbers<[1], [0], [0], [1], [0, 0, 1, 1], [], []>} : vector<16x64xf32>, vector<64x128xf32>, vector<16x128xf32> -> vector<16x128xf32>
    %20 = arith.addf %15, %19 : vector<16x128xf32>
    %21 = vector.extract_strided_slice %9 {offsets = [2, 0], sizes = [16, 64], strides = [1, 1]} : vector<20x64xf32> to vector<16x64xf32>
    %c2 = arith.constant 2 : index
    %c0_14 = arith.constant 0 : index
    %c0_15 = arith.constant 0 : index
    %22 = vector.load %arg4[%c2, %c0_14, %c0_15] : memref<5x64x128xf32, #tpu.memory_space<vmem>>, vector<1x64x128xf32>
    %23 = vector.shape_cast %22 : vector<1x64x128xf32> to vector<64x128xf32>
    %cst_16 = arith.constant dense<0.000000e+00> : vector<16x128xf32>
    %24 = tpu.matmul %21, %23, %cst_16 {dimension_numbers = #tpu.dot_dimension_numbers<[1], [0], [0], [1], [0, 0, 1, 1], [], []>} : vector<16x64xf32>, vector<64x128xf32>, vector<16x128xf32> -> vector<16x128xf32>
    %25 = arith.addf %20, %24 : vector<16x128xf32>
    %26 = vector.extract_strided_slice %9 {offsets = [3, 0], sizes = [16, 64], strides = [1, 1]} : vector<20x64xf32> to vector<16x64xf32>
    %c3 = arith.constant 3 : index
    %c0_17 = arith.constant 0 : index
    %c0_18 = arith.constant 0 : index
    %27 = vector.load %arg4[%c3, %c0_17, %c0_18] : memref<5x64x128xf32, #tpu.memory_space<vmem>>, vector<1x64x128xf32>
    %28 = vector.shape_cast %27 : vector<1x64x128xf32> to vector<64x128xf32>
    %cst_19 = arith.constant dense<0.000000e+00> : vector<16x128xf32>
    %29 = tpu.matmul %26, %28, %cst_19 {dimension_numbers = #tpu.dot_dimension_numbers<[1], [0], [0], [1], [0, 0, 1, 1], [], []>} : vector<16x64xf32>, vector<64x128xf32>, vector<16x128xf32> -> vector<16x128xf32>
    %30 = arith.addf %25, %29 : vector<16x128xf32>
    %31 = vector.extract_strided_slice %9 {offsets = [4, 0], sizes = [16, 64], strides = [1, 1]} : vector<20x64xf32> to vector<16x64xf32>
    %c4 = arith.constant 4 : index
    %c0_20 = arith.constant 0 : index
    %c0_21 = arith.constant 0 : index
    %32 = vector.load %arg4[%c4, %c0_20, %c0_21] : memref<5x64x128xf32, #tpu.memory_space<vmem>>, vector<1x64x128xf32>
    %33 = vector.shape_cast %32 : vector<1x64x128xf32> to vector<64x128xf32>
    %cst_22 = arith.constant dense<0.000000e+00> : vector<16x128xf32>
    %34 = tpu.matmul %31, %33, %cst_22 {dimension_numbers = #tpu.dot_dimension_numbers<[1], [0], [0], [1], [0, 0, 1, 1], [], []>} : vector<16x64xf32>, vector<64x128xf32>, vector<16x128xf32> -> vector<16x128xf32>
    %35 = arith.addf %30, %34 : vector<16x128xf32>
    %36 = vector.shape_cast %35 : vector<16x128xf32> to vector<1x16x128xf32>
    %c0_23 = arith.constant 0 : index
    %c0_24 = arith.constant 0 : index
    %c0_25 = arith.constant 0 : index
    %37 = vector.load %arg5[%c0_23, %c0_24, %c0_25] : memref<1x16x128xf32, #tpu.memory_space<vmem>>, vector<1x16x128xf32>
    tpu.vector_store %arg5[%c0_23, %c0_24, %c0_25], %36 {strides = array<i32>} : memref<1x16x128xf32, #tpu.memory_space<vmem>>, vector<1x16x128xf32>,
    %cst_26 = arith.constant dense<0.000000e+00> : vector<128xf32>
    %38 = vector.multi_reduction <add>, %35, %cst_26 [0] : vector<16x128xf32> to vector<128xf32>
    %39 = vector.shape_cast %38 : vector<128xf32> to vector<1x128xf32>
    %40 = arith.mulf %35, %35 : vector<16x128xf32>
    %cst_27 = arith.constant dense<0.000000e+00> : vector<128xf32>
    %41 = vector.multi_reduction <add>, %40, %cst_27 [0] : vector<16x128xf32> to vector<128xf32>
    %42 = vector.shape_cast %41 : vector<128xf32> to vector<1x128xf32>
    %43 = tpu.concatenate %39, %42 in 0 : vector<1x128xf32>, vector<1x128xf32> -> vector<2x128xf32>
    %44 = vector.shape_cast %43 : vector<2x128xf32> to vector<1x2x128xf32>
    %c0_28 = arith.constant 0 : index
    %c0_29 = arith.constant 0 : index
    %c0_30 = arith.constant 0 : index
    %45 = vector.load %arg6[%c0_28, %c0_29, %c0_30] : memref<1x2x128xf32, #tpu.memory_space<vmem>>, vector<1x2x128xf32>
    tpu.vector_store %arg6[%c0_28, %c0_29, %c0_30], %44 {strides = array<i32>} : memref<1x2x128xf32, #tpu.memory_space<vmem>>, vector<1x2x128xf32>,
    return
  }
  func.func @transform_0(%arg0: i32) -> (i32, i32, i32) {
    %c0_i32 = arith.constant 0 : i32
    %c0_i32_0 = arith.constant 0 : i32
    %c0_i32_1 = arith.constant 0 : i32
    return %arg0, %c0_i32, %c0_i32_0 : i32, i32, i32
  }
  func.func @transform_1(%arg0: i32) -> (i32, i32) {
    %c0_i32 = arith.constant 0 : i32
    %c0_i32_0 = arith.constant 0 : i32
    %c0_i32_1 = arith.constant 0 : i32
    return %c0_i32, %c0_i32_0 : i32, i32
  }
  func.func @transform_2(%arg0: i32) -> (i32, i32) {
    %c0_i32 = arith.constant 0 : i32
    %c0_i32_0 = arith.constant 0 : i32
    %c0_i32_1 = arith.constant 0 : i32
    return %c0_i32, %c0_i32_0 : i32, i32
  }
  func.func @transform_3(%arg0: i32) -> (i32, i32, i32) {
    %c0_i32 = arith.constant 0 : i32
    %c0_i32_0 = arith.constant 0 : i32
    %c0_i32_1 = arith.constant 0 : i32
    %c0_i32_2 = arith.constant 0 : i32
    return %c0_i32, %c0_i32_0, %c0_i32_1 : i32, i32, i32
  }
  func.func @transform_4(%arg0: i32) -> (i32, i32, i32) {
    %c0_i32 = arith.constant 0 : i32
    %c0_i32_0 = arith.constant 0 : i32
    %c0_i32_1 = arith.constant 0 : i32
    return %arg0, %c0_i32, %c0_i32_0 : i32, i32, i32
  }
  func.func @transform_5(%arg0: i32) -> (i32, i32, i32) {
    %c0_i32 = arith.constant 0 : i32
    %c0_i32_0 = arith.constant 0 : i32
    %c0_i32_1 = arith.constant 0 : i32
    return %arg0, %c0_i32, %c0_i32_0 : i32, i32, i32
  }
}

module attributes {stable_mosaic.version = 11 : i64} {
  func.func @_affine_pad_conv_kernel(%arg0: i32, %arg1: memref<1x16x128xf32, #tpu.memory_space<vmem>>, %arg2: memref<1x128xf32, #tpu.memory_space<vmem>>, %arg3: memref<1x128xf32, #tpu.memory_space<vmem>>, %arg4: memref<3x128x64xf32, #tpu.memory_space<vmem>>, %arg5: memref<1x16x64xf32, #tpu.memory_space<vmem>>, %arg6: memref<1x2x64xf32, #tpu.memory_space<vmem>>) attributes {dimension_semantics = [#tpu.dimension_semantics<parallel>], iteration_bounds = array<i64: 2>, scalar_prefetch = 0 : i64, scratch_operands = 0 : i64, tpu.core_type = #tpu.core_type<tc>, window_params = [{transform_indices = @transform_0, window_bounds = array<i64: 1, 16, 128>}, {pipeline_mode = #tpu.pipeline_mode<synchronous>, transform_indices = @transform_1, window_bounds = array<i64: 1, 128>}, {pipeline_mode = #tpu.pipeline_mode<synchronous>, transform_indices = @transform_2, window_bounds = array<i64: 1, 128>}, {pipeline_mode = #tpu.pipeline_mode<synchronous>, transform_indices = @transform_3, window_bounds = array<i64: 3, 128, 64>}, {transform_indices = @transform_4, window_bounds = array<i64: 1, 16, 64>}, {transform_indices = @transform_5, window_bounds = array<i64: 1, 2, 64>}]} {
    %c0 = arith.constant 0 : index
    %c0_0 = arith.constant 0 : index
    %c0_1 = arith.constant 0 : index
    %0 = vector.load %arg1[%c0, %c0_0, %c0_1] : memref<1x16x128xf32, #tpu.memory_space<vmem>>, vector<1x16x128xf32>
    %1 = vector.shape_cast %0 : vector<1x16x128xf32> to vector<16x128xf32>
    %c0_2 = arith.constant 0 : index
    %c0_3 = arith.constant 0 : index
    %2 = vector.load %arg2[%c0_2, %c0_3] : memref<1x128xf32, #tpu.memory_space<vmem>>, vector<1x128xf32>
    %3 = vector.broadcast %2 : vector<1x128xf32> to vector<16x128xf32>
    %4 = arith.mulf %1, %3 : vector<16x128xf32>
    %c0_4 = arith.constant 0 : index
    %c0_5 = arith.constant 0 : index
    %5 = vector.load %arg3[%c0_4, %c0_5] : memref<1x128xf32, #tpu.memory_space<vmem>>, vector<1x128xf32>
    %6 = vector.broadcast %5 : vector<1x128xf32> to vector<16x128xf32>
    %7 = arith.addf %4, %6 : vector<16x128xf32>
    %cst = arith.constant 0.000000e+00 : f32
    %8 = vector.broadcast %cst : f32 to vector<1x128xf32>
    %9 = tpu.concatenate %8, %7, %8 in 0 : vector<1x128xf32>, vector<16x128xf32>, vector<1x128xf32> -> vector<18x128xf32>
    %cst_6 = arith.constant 0.000000e+00 : f32
    %10 = vector.broadcast %cst_6 : f32 to vector<16x64xf32>
    %11 = vector.extract_strided_slice %9 {offsets = [0, 0], sizes = [16, 128], strides = [1, 1]} : vector<18x128xf32> to vector<16x128xf32>
    %c0_7 = arith.constant 0 : index
    %c0_8 = arith.constant 0 : index
    %c0_9 = arith.constant 0 : index
    %12 = vector.load %arg4[%c0_7, %c0_8, %c0_9] : memref<3x128x64xf32, #tpu.memory_space<vmem>>, vector<1x128x64xf32>
    %13 = vector.shape_cast %12 : vector<1x128x64xf32> to vector<128x64xf32>
    %cst_10 = arith.constant dense<0.000000e+00> : vector<16x64xf32>
    %14 = tpu.matmul %11, %13, %cst_10 {dimension_numbers = #tpu.dot_dimension_numbers<[1], [0], [0], [1], [0, 0, 1, 1], [], []>} : vector<16x128xf32>, vector<128x64xf32>, vector<16x64xf32> -> vector<16x64xf32>
    %15 = arith.addf %10, %14 : vector<16x64xf32>
    %16 = vector.extract_strided_slice %9 {offsets = [1, 0], sizes = [16, 128], strides = [1, 1]} : vector<18x128xf32> to vector<16x128xf32>
    %c1 = arith.constant 1 : index
    %c0_11 = arith.constant 0 : index
    %c0_12 = arith.constant 0 : index
    %17 = vector.load %arg4[%c1, %c0_11, %c0_12] : memref<3x128x64xf32, #tpu.memory_space<vmem>>, vector<1x128x64xf32>
    %18 = vector.shape_cast %17 : vector<1x128x64xf32> to vector<128x64xf32>
    %cst_13 = arith.constant dense<0.000000e+00> : vector<16x64xf32>
    %19 = tpu.matmul %16, %18, %cst_13 {dimension_numbers = #tpu.dot_dimension_numbers<[1], [0], [0], [1], [0, 0, 1, 1], [], []>} : vector<16x128xf32>, vector<128x64xf32>, vector<16x64xf32> -> vector<16x64xf32>
    %20 = arith.addf %15, %19 : vector<16x64xf32>
    %21 = vector.extract_strided_slice %9 {offsets = [2, 0], sizes = [16, 128], strides = [1, 1]} : vector<18x128xf32> to vector<16x128xf32>
    %c2 = arith.constant 2 : index
    %c0_14 = arith.constant 0 : index
    %c0_15 = arith.constant 0 : index
    %22 = vector.load %arg4[%c2, %c0_14, %c0_15] : memref<3x128x64xf32, #tpu.memory_space<vmem>>, vector<1x128x64xf32>
    %23 = vector.shape_cast %22 : vector<1x128x64xf32> to vector<128x64xf32>
    %cst_16 = arith.constant dense<0.000000e+00> : vector<16x64xf32>
    %24 = tpu.matmul %21, %23, %cst_16 {dimension_numbers = #tpu.dot_dimension_numbers<[1], [0], [0], [1], [0, 0, 1, 1], [], []>} : vector<16x128xf32>, vector<128x64xf32>, vector<16x64xf32> -> vector<16x64xf32>
    %25 = arith.addf %20, %24 : vector<16x64xf32>
    %26 = vector.shape_cast %25 : vector<16x64xf32> to vector<1x16x64xf32>
    %c0_17 = arith.constant 0 : index
    %c0_18 = arith.constant 0 : index
    %c0_19 = arith.constant 0 : index
    %27 = vector.load %arg5[%c0_17, %c0_18, %c0_19] : memref<1x16x64xf32, #tpu.memory_space<vmem>>, vector<1x16x64xf32>
    tpu.vector_store %arg5[%c0_17, %c0_18, %c0_19], %26 {strides = array<i32>} : memref<1x16x64xf32, #tpu.memory_space<vmem>>, vector<1x16x64xf32>,
    %cst_20 = arith.constant dense<0.000000e+00> : vector<64xf32>
    %28 = vector.multi_reduction <add>, %25, %cst_20 [0] : vector<16x64xf32> to vector<64xf32>
    %29 = vector.shape_cast %28 : vector<64xf32> to vector<1x64xf32>
    %30 = arith.mulf %25, %25 : vector<16x64xf32>
    %cst_21 = arith.constant dense<0.000000e+00> : vector<64xf32>
    %31 = vector.multi_reduction <add>, %30, %cst_21 [0] : vector<16x64xf32> to vector<64xf32>
    %32 = vector.shape_cast %31 : vector<64xf32> to vector<1x64xf32>
    %33 = tpu.concatenate %29, %32 in 0 : vector<1x64xf32>, vector<1x64xf32> -> vector<2x64xf32>
    %34 = vector.shape_cast %33 : vector<2x64xf32> to vector<1x2x64xf32>
    %c0_22 = arith.constant 0 : index
    %c0_23 = arith.constant 0 : index
    %c0_24 = arith.constant 0 : index
    %35 = vector.load %arg6[%c0_22, %c0_23, %c0_24] : memref<1x2x64xf32, #tpu.memory_space<vmem>>, vector<1x2x64xf32>
    tpu.vector_store %arg6[%c0_22, %c0_23, %c0_24], %34 {strides = array<i32>} : memref<1x2x64xf32, #tpu.memory_space<vmem>>, vector<1x2x64xf32>,
    return
  }
  func.func @transform_0(%arg0: i32) -> (i32, i32, i32) {
    %c0_i32 = arith.constant 0 : i32
    %c0_i32_0 = arith.constant 0 : i32
    %c0_i32_1 = arith.constant 0 : i32
    return %arg0, %c0_i32, %c0_i32_0 : i32, i32, i32
  }
  func.func @transform_1(%arg0: i32) -> (i32, i32) {
    %c0_i32 = arith.constant 0 : i32
    %c0_i32_0 = arith.constant 0 : i32
    %c0_i32_1 = arith.constant 0 : i32
    return %c0_i32, %c0_i32_0 : i32, i32
  }
  func.func @transform_2(%arg0: i32) -> (i32, i32) {
    %c0_i32 = arith.constant 0 : i32
    %c0_i32_0 = arith.constant 0 : i32
    %c0_i32_1 = arith.constant 0 : i32
    return %c0_i32, %c0_i32_0 : i32, i32
  }
  func.func @transform_3(%arg0: i32) -> (i32, i32, i32) {
    %c0_i32 = arith.constant 0 : i32
    %c0_i32_0 = arith.constant 0 : i32
    %c0_i32_1 = arith.constant 0 : i32
    %c0_i32_2 = arith.constant 0 : i32
    return %c0_i32, %c0_i32_0, %c0_i32_1 : i32, i32, i32
  }
  func.func @transform_4(%arg0: i32) -> (i32, i32, i32) {
    %c0_i32 = arith.constant 0 : i32
    %c0_i32_0 = arith.constant 0 : i32
    %c0_i32_1 = arith.constant 0 : i32
    return %arg0, %c0_i32, %c0_i32_0 : i32, i32, i32
  }
  func.func @transform_5(%arg0: i32) -> (i32, i32, i32) {
    %c0_i32 = arith.constant 0 : i32
    %c0_i32_0 = arith.constant 0 : i32
    %c0_i32_1 = arith.constant 0 : i32
    return %arg0, %c0_i32, %c0_i32_0 : i32, i32, i32
  }
}

</mosaic_0001>

<llo_original>
// kernel: tile.32
$region0: #{tile.32}
  #allocation0 [shape = 's32[1]{0}', space=sflag, size = 0x4, scoped, tag = 'scoped memory for tile.32']
  %s0 = inlined_call_operand.<no memory space> [shape: f32[], index: 0, kind: input, shape index: {}]
  %s1 = inlined_call_operand.vmem [shape: f32[1,192], index: 1, kind: output, shape index: {}]
  %v2 = vstv %s0
  %3 = vst [vmem:[%s1] sm:$0x1] %v2
  %s4 = scalar_lea.vmem %s1, 1
  %5 = vst [vmem:[%s4] sm:$0x1] %v2

// kernel: conv_block_forward.3
$region0: #{conv_block_forward.3}
  #allocation0 [shape = 'u32[]', space=smem, size = 0x4, offset = 0x4, fixed_abs, tag = 'smem constant byte address 0x4 - core index']
  #allocation1 [shape = 'u32[144,128]{1,0:T(1,128)}', space=vmem, size = 0x12000, scoped, tag = 'internal scratch']
  %s0 = inlined_call_operand.vmem [shape: f32[2,16,192], index: 0, kind: input, shape index: {}]
  %s1 = inlined_call_operand.vmem [shape: f32[1,192], index: 1, kind: input, shape index: {}]
  %s2 = inlined_call_operand.vmem [shape: f32[1,192], index: 2, kind: input, shape index: {}]
  %s3 = inlined_call_operand.vmem [shape: f32[3,192,64], index: 3, kind: input, shape index: {}]
  %s4 = inlined_call_operand.vmem [shape: f32[2,16,64], index: 4, kind: output, shape index: {0}]
  %s5 = inlined_call_operand.vmem [shape: f32[2,2,64], index: 5, kind: output, shape index: {1}]
  %6 = xla_tuple %s4, %s5
  %s7 = sld [smem:[#allocation0]]
  $region57: #{conv_block_forward.3} parent=0
    _
  %s9 = ssub.s32 1, %s7
  %s10 = scalar_select 0, %s9, %s7
  loop: start=0, step=1, limit=4
  $region2: #{conv_block_forward.3} parent=0 // loop_pre_header
    _
  $region3: #{conv_block_forward.3} parent=0 // loop_header
    %s12 = sphi 0, %s16
    %p13 = scmp.ge.s32.totalorder %s12, 4
    %s22 = sphi 0, %s24
    %s25 = sphi 0, %s22
    %s26 = sphi 0, %s25
    %s42 = sphi 0, %s26
    %s46 = sphi 0, %s46
    %s48 = sphi 0, %s46
    %s49 = sphi 0, %s48
    %s63 = sphi 0, %s49
    %s67 = sphi 0, %s67
    %s69 = sphi 0, %s67
    %s70 = sphi 0, %s69
    %s84 = sphi 0, %s70
    %s88 = sphi 0, %s88
    %s90 = sphi 0, %s88
    %s91 = sphi 0, %s90
    %s105 = sphi 0, %s91
    %s111 = sphi 0, %s113
    %s114 = sphi 0, %s111
    %s115 = sphi 0, %s114
    %s131 = sphi 0, %s115
    %s137 = sphi 0, %s139
    %s140 = sphi 0, %s137
    %s141 = sphi 0, %s140
    %s157 = sphi 0, %s141
  $region4: #{conv_block_forward.3} parent=0 // loop_header_branch
    %15 = sbr.rel (%p13) target = $region8
  $region5: #{conv_block_forward.3} parent=0 // loop_body
    %s17 = ssub.s32 %s12, 1
    %s18 = ssub.s32 %s12, 2
    %s19 = sadd.s32 %s12, 1
    %s20 = ssub.s32 %s12, %s19
    %p21 = scmp.eq.s32.totalorder %s20, 0
    %s23 = sadd.s32 %s22, 1
    %s24 = scalar_select %p21, %s22, %s23
    %p27 = pneg %p21
    %p28 = scmp.eq.s32.totalorder %s12, 1
    %p29 = por %p27, %p28
    %p30 = scmp.ne.s32.totalorder %s22, %s25
    %p31 = scmp.eq.s32.totalorder %s12, 0
    %p32 = por %p30, %p31
    %p33 = scmp.ne.s32.totalorder %s22, %s25
    %p34 = scmp.eq.s32.totalorder %s17, 1
    %p35 = por %p33, %p34
    %p36 = scmp.ne.s32.totalorder %s25, %s26
    %p37 = scmp.eq.s32.totalorder %s17, 0
    %p38 = por %p36, %p37
    %p39 = scmp.ne.s32.totalorder %s25, %s26
    %p40 = scmp.eq.s32.totalorder %s18, 1
    %p41 = por %p39, %p40
    %p43 = scmp.ne.s32.totalorder %s26, %s42
    %p44 = scmp.eq.s32.totalorder %s18, 0
    %p45 = por %p43, %p44
    %s47 = sadd.s32 %s46, 1
    %p50 = scmp.eq.s32.totalorder %s12, 1
    %p51 = scmp.ne.s32.totalorder %s46, %s48
    %p52 = scmp.eq.s32.totalorder %s12, 0
    %p53 = por %p51, %p52
    %p54 = scmp.ne.s32.totalorder %s46, %s48
    %p55 = scmp.eq.s32.totalorder %s17, 1
    %p56 = por %p54, %p55
    %p57 = scmp.ne.s32.totalorder %s48, %s49
    %p58 = scmp.eq.s32.totalorder %s17, 0
    %p59 = por %p57, %p58
    %p60 = scmp.ne.s32.totalorder %s48, %s49
    %p61 = scmp.eq.s32.totalorder %s18, 1
    %p62 = por %p60, %p61
    %p64 = scmp.ne.s32.totalorder %s49, %s63
    %p65 = scmp.eq.s32.totalorder %s18, 0
    %p66 = por %p64, %p65
    %s68 = sadd.s32 %s67, 1
    %p71 = scmp.eq.s32.totalorder %s12, 1
    %p72 = scmp.ne.s32.totalorder %s67, %s69
    %p73 = scmp.eq.s32.totalorder %s12, 0
    %p74 = por %p72, %p73
    %p75 = scmp.ne.s32.totalorder %s67, %s69
    %p76 = scmp.eq.s32.totalorder %s17, 1
    %p77 = por %p75, %p76
    %p78 = scmp.ne.s32.totalorder %s69, %s70
    %p79 = scmp.eq.s32.totalorder %s17, 0
    %p80 = por %p78, %p79
    %p81 = scmp.ne.s32.totalorder %s69, %s70
    %p82 = scmp.eq.s32.totalorder %s18, 1
    %p83 = por %p81, %p82
    %p85 = scmp.ne.s32.totalorder %s70, %s84
    %p86 = scmp.eq.s32.totalorder %s18, 0
    %p87 = por %p85, %p86
    %s89 = sadd.s32 %s88, 1
    %p92 = scmp.eq.s32.totalorder %s12, 1
    %p93 = scmp.ne.s32.totalorder %s88, %s90
    %p94 = scmp.eq.s32.totalorder %s12, 0
    %p95 = por %p93, %p94
    %p96 = scmp.ne.s32.totalorder %s88, %s90
    %p97 = scmp.eq.s32.totalorder %s17, 1
    %p98 = por %p96, %p97
    %p99 = scmp.ne.s32.totalorder %s90, %s91
    %p100 = scmp.eq.s32.totalorder %s17, 0
    %p101 = por %p99, %p100
    %p102 = scmp.ne.s32.totalorder %s90, %s91
    %p103 = scmp.eq.s32.totalorder %s18, 1
    %p104 = por %p102, %p103
    %p106 = scmp.ne.s32.totalorder %s91, %s105
    %p107 = scmp.eq.s32.totalorder %s18, 0
    %p108 = por %p106, %p107
    %s109 = ssub.s32 %s12, %s19
    %p110 = scmp.eq.s32.totalorder %s109, 0
    %s112 = sadd.s32 %s111, 1
    %s113 = scalar_select %p110, %s111, %s112
    %p116 = pneg %p110
    %p117 = scmp.eq.s32.totalorder %s12, 1
    %p118 = por %p116, %p117
    %p119 = scmp.ne.s32.totalorder %s111, %s114
    %p120 = scmp.eq.s32.totalorder %s12, 0
    %p121 = por %p119, %p120
    %p122 = scmp.ne.s32.totalorder %s111, %s114
    %p123 = scmp.eq.s32.totalorder %s17, 1
    %p124 = por %p122, %p123
    %p125 = scmp.ne.s32.totalorder %s114, %s115
    %p126 = scmp.eq.s32.totalorder %s17, 0
    %p127 = por %p125, %p126
    %p128 = scmp.ne.s32.totalorder %s114, %s115
    %p129 = scmp.eq.s32.totalorder %s18, 1
    %p130 = por %p128, %p129
    %p132 = scmp.ne.s32.totalorder %s115, %s131
    %p133 = scmp.eq.s32.totalorder %s18, 0
    %p134 = por %p132, %p133
    %s135 = ssub.s32 %s12, %s19
    %p136 = scmp.eq.s32.totalorder %s135, 0
    %s138 = sadd.s32 %s137, 1
    %s139 = scalar_select %p136, %s137, %s138
    %p142 = pneg %p136
    %p143 = scmp.eq.s32.totalorder %s12, 1
    %p144 = por %p142, %p143
    %p145 = scmp.ne.s32.totalorder %s137, %s140
    %p146 = scmp.eq.s32.totalorder %s12, 0
    %p147 = por %p145, %p146
    %p148 = scmp.ne.s32.totalorder %s137, %s140
    %p149 = scmp.eq.s32.totalorder %s17, 1
    %p150 = por %p148, %p149
    %p151 = scmp.ne.s32.totalorder %s140, %s141
    %p152 = scmp.eq.s32.totalorder %s17, 0
    %p153 = por %p151, %p152
    %p154 = scmp.ne.s32.totalorder %s140, %s141
    %p155 = scmp.eq.s32.totalorder %s18, 1
    %p156 = por %p154, %p155
    %p158 = scmp.ne.s32.totalorder %s141, %s157
    %p159 = scmp.eq.s32.totalorder %s18, 0
    %p160 = por %p158, %p159
    %p161 = scmp.le.s32.totalorder 1, %s12
    %p162 = scmp.lt.s32.totalorder %s12, 3
    %p163 = pnand %p161, %p162
    %p164 = pneg %p163
    // Predicated region
    $region9: #{conv_block_forward.3} parent=5 // pred_check
      _
    $region10: #{conv_block_forward.3} parent=5 // pred_check_branch
      %166 = sbr.rel (%p163) target = $region12
    $region11: #{conv_block_forward.3} parent=5 // pred_region
      %s167 = ssub.s32 %s12, 1
      // Predicated region
      $region13: #{conv_block_forward.3} parent=11 // pred_check
        %p168 = pneg %p59
      $region14: #{conv_block_forward.3} parent=11 // pred_check_branch
        %170 = sbr.rel (%p168) target = $region16
      $region15: #{conv_block_forward.3} parent=11 // pred_region
        _
      $region16: #{conv_block_forward.3} parent=11 // pred_fallthru
        _
      // Predicated region
      $region17: #{conv_block_forward.3} parent=11 // pred_check
        %p171 = pneg %p80
      $region18: #{conv_block_forward.3} parent=11 // pred_check_branch
        %173 = sbr.rel (%p171) target = $region20
      $region19: #{conv_block_forward.3} parent=11 // pred_region
        _
      $region20: #{conv_block_forward.3} parent=11 // pred_fallthru
        _
      // Predicated region
      $region21: #{conv_block_forward.3} parent=11 // pred_check
        %p174 = pneg %p101
      $region22: #{conv_block_forward.3} parent=11 // pred_check_branch
        %176 = sbr.rel (%p174) target = $region24
      $region23: #{conv_block_forward.3} parent=11 // pred_region
        _
      $region24: #{conv_block_forward.3} parent=11 // pred_fallthru
        _
    $region12: #{conv_block_forward.3} parent=5 // pred_fallthru
      _
    %p177 = scmp.lt.s32.totalorder %s12, 2
    // Predicated region
    $region25: #{conv_block_forward.3} parent=5 // pred_check
      %p178 = pneg %p177
    $region26: #{conv_block_forward.3} parent=5 // pred_check_branch
      %180 = sbr.rel (%p178) target = $region28
    $region27: #{conv_block_forward.3} parent=5 // pred_region
      // Predicated region
      $region29: #{conv_block_forward.3} parent=27 // pred_check
        %p181 = pneg %p32
      $region30: #{conv_block_forward.3} parent=27 // pred_check_branch
        %183 = sbr.rel (%p181) target = $region32
      $region31: #{conv_block_forward.3} parent=27 // pred_region
        %p184 = scmp.lt.s32.totalorder %s12, 1
        %s185 = scalar_select %p184, %s12, 1
        %s186 = smul.addr %s185, 4
        %s187 = smul.addr %s186, 8
        %s188 = scalar_lea.vmem %s0, %s187
      $region32: #{conv_block_forward.3} parent=27 // pred_fallthru
        _
    $region28: #{conv_block_forward.3} parent=5 // pred_fallthru
      _
    %p189 = scmp.le.s32.totalorder 1, %s12
    %p190 = scmp.lt.s32.totalorder %s12, 3
    %p191 = pnand %p189, %p190
    %p192 = pneg %p191
    // Predicated region
    $region33: #{conv_block_forward.3} parent=5 // pred_check
      _
    $region34: #{conv_block_forward.3} parent=5 // pred_check_branch
      %194 = sbr.rel (%p191) target = $region36
    $region35: #{conv_block_forward.3} parent=5 // pred_region
      %s195 = ssub.s32 %s12, 1
      %p196 = scmp.lt.s32.totalorder %s17, 1
      %s197 = scalar_select %p196, %s17, 1
      %s198 = smul.addr %s197, 4
      %s199 = smul.addr %s198, 8
      %s200 = scalar_lea.vmem %s0, %s199
      %p201 = pneg %p38
      %p202 = pneg %p35
      %p203 = pneg %p59
      %p204 = pneg %p56
      %p205 = pneg %p80
      %p206 = pneg %p77
      %p207 = pneg %p101
      %p208 = pneg %p98
      %p209 = pneg %p127
      %p210 = pneg %p124
      %p211 = scmp.lt.s32.totalorder %s17, 1
      %s212 = scalar_select %p211, %s17, 1
      %s213 = smul.addr %s212, 2
      %s214 = smul.addr %s213, 8
      %s215 = scalar_lea.vmem %s4, %s214
      %p216 = pneg %p153
      %p217 = pneg %p150
      %p218 = scmp.lt.s32.totalorder %s17, 1
      %s219 = scalar_select %p218, %s17, 1
      %s220 = smul.addr %s219, 2
      %s221 = scalar_lea.vmem %s5, %s220
      %p222 = scmp.lt.s32.totalorder %s17, 1
      %s223 = scalar_select %p222, %s17, 1
      %s224 = smul.addr %s223, 4
      %s225 = smul.addr %s224, 8
      %s226 = scalar_lea.vmem %s0, %s225
      %p227 = scmp.lt.s32.totalorder %s17, 1
      %s228 = scalar_select %p227, %s17, 1
      %s229 = smul.addr %s228, 2
      %s230 = smul.addr %s229, 8
      %s231 = scalar_lea.vmem %s4, %s230
      %p232 = scmp.lt.s32.totalorder %s17, 1
      %s233 = scalar_select %p232, %s17, 1
      %s234 = smul.addr %s233, 2
      %s235 = scalar_lea.vmem %s5, %s234
      %v236 = vld [vmem:[%s226] sm:$0xff]
      %v237 = vld [vmem:[%s226 + $0x8] sm:$0xff]
      %v238 = vld [vmem:[%s226 + $0x10] sm:$0xff]
      %v239 = vld [vmem:[%s226 + $0x18] sm:$0xff]
      %v240 = vld [vmem:[%s1] sm:$0x3]
      %v242 = vlaneseq
      %v243 = vshrl.u32 %v242, 7
      %v244 = vsub.s32 0, %v243
      %v245 = vrot.slane %v240, %v244
      %v246 = vlaneseq
      %v247 = vshrl.u32 %v246, 7
      %v248 = vsub.s32 1, %v247
      %v249 = vrot.slane %v240, %v248
      %v252 = vmul.f32 %v236, %v245
      %v253 = vmul.f32 %v237, %v249
      %v254 = vmul.f32 %v238, %v245
      %v255 = vmul.f32 %v239, %v249
      %v256 = vld [vmem:[%s2] sm:$0x3]
      %v258 = vlaneseq
      %v259 = vshrl.u32 %v258, 7
      %v260 = vsub.s32 0, %v259
      %v261 = vrot.slane %v256, %v260
      %v262 = vlaneseq
      %v263 = vshrl.u32 %v262, 7
      %v264 = vsub.s32 1, %v263
      %v265 = vrot.slane %v256, %v264
      %v268 = vadd.f32 %v252, %v261
      %v269 = vadd.f32 %v253, %v265
      %v270 = vadd.f32 %v254, %v261
      %v271 = vadd.f32 %v255, %v265
      %vm276 = vcmask 1040384
      %v277 = vrot.slane %v268, 7
      %v278 = vrot.slane %v269, 7
      %v279 = vrot.slane %v270, 7
      %v280 = vsel %vm276, %v277, %v279
      %v281 = vrot.slane %v271, 7
      %v282 = vsel %vm276, %v278, %v281
      %v288 = vsel %vm276, 0.0, %v277
      %v289 = vsel %vm276, 0.0, %v278
      %v290 = vsel %vm276, %v279, 0.0
      %v291 = vsel %vm276, %v281, 0.0
      %v292 = vld [vmem:[%s3] sm:$0xff]
      %v293 = vld [vmem:[%s3 + $0x8] sm:$0xff]
      %v294 = vld [vmem:[%s3 + $0x10] sm:$0xff]
      %v295 = vld [vmem:[%s3 + $0x18] sm:$0xff]
      %v296 = vld [vmem:[%s3 + $0x20] sm:$0xff]
      %v297 = vld [vmem:[%s3 + $0x28] sm:$0xff]
      %v298 = vld [vmem:[%s3 + $0x30] sm:$0xff]
      %v299 = vld [vmem:[%s3 + $0x38] sm:$0xff]
      %v300 = vld [vmem:[%s3 + $0x40] sm:$0xff]
      %v301 = vld [vmem:[%s3 + $0x48] sm:$0xff]
      %v302 = vld [vmem:[%s3 + $0x50] sm:$0xff]
      %v303 = vld [vmem:[%s3 + $0x58] sm:$0xff]
      %v304 = vld [vmem:[%s3 + $0x60] sm:$0xff]
      %v305 = vld [vmem:[%s3 + $0x68] sm:$0xff]
      %v306 = vld [vmem:[%s3 + $0x70] sm:$0xff]
      %v307 = vld [vmem:[%s3 + $0x78] sm:$0xff]
      %v308 = vld [vmem:[%s3 + $0x80] sm:$0xff]
      %v309 = vld [vmem:[%s3 + $0x88] sm:$0xff]
      %v310 = vld [vmem:[%s3 + $0x90] sm:$0xff]
      %v311 = vld [vmem:[%s3 + $0x98] sm:$0xff]
      %v312 = vld [vmem:[%s3 + $0xa0] sm:$0xff]
      %v313 = vld [vmem:[%s3 + $0xa8] sm:$0xff]
      %v314 = vld [vmem:[%s3 + $0xb0] sm:$0xff]
      %v315 = vld [vmem:[%s3 + $0xb8] sm:$0xff]
      %s316 = scalar_lea.vmem %s3, 192
      %v317 = vld [vmem:[%s316] sm:$0xff]
      %v318 = vld [vmem:[%s316 + $0x8] sm:$0xff]
      %v319 = vld [vmem:[%s316 + $0x10] sm:$0xff]
      %v320 = vld [vmem:[%s316 + $0x18] sm:$0xff]
      %v321 = vld [vmem:[%s316 + $0x20] sm:$0xff]
      %v322 = vld [vmem:[%s316 + $0x28] sm:$0xff]
      %v323 = vld [vmem:[%s316 + $0x30] sm:$0xff]
      %v324 = vld [vmem:[%s316 + $0x38] sm:$0xff]
      %v325 = vld [vmem:[%s316 + $0x40] sm:$0xff]
      %v326 = vld [vmem:[%s316 + $0x48] sm:$0xff]
      %v327 = vld [vmem:[%s316 + $0x50] sm:$0xff]
      %v328 = vld [vmem:[%s316 + $0x58] sm:$0xff]
      %v329 = vld [vmem:[%s316 + $0x60] sm:$0xff]
      %v330 = vld [vmem:[%s316 + $0x68] sm:$0xff]
      %v331 = vld [vmem:[%s316 + $0x70] sm:$0xff]
      %v332 = vld [vmem:[%s316 + $0x78] sm:$0xff]
      %v333 = vld [vmem:[%s316 + $0x80] sm:$0xff]
      %v334 = vld [vmem:[%s316 + $0x88] sm:$0xff]
      %v335 = vld [vmem:[%s316 + $0x90] sm:$0xff]
      %v336 = vld [vmem:[%s316 + $0x98] sm:$0xff]
      %v337 = vld [vmem:[%s316 + $0xa0] sm:$0xff]
      %v338 = vld [vmem:[%s316 + $0xa8] sm:$0xff]
      %v339 = vld [vmem:[%s316 + $0xb0] sm:$0xff]
      %v340 = vld [vmem:[%s316 + $0xb8] sm:$0xff]
      %vm345 = vcmask 1046528
      %v346 = vrot.slane %v288, 1
      %v347 = vrot.slane %v280, 1
      %v348 = vsel %vm345, %v346, %v347
      %v349 = vrot.slane %v289, 1
      %v350 = vrot.slane %v282, 1
      %v351 = vsel %vm345, %v349, %v350
      %v352 = vrot.slane %v290, 1
      %v353 = vsel %vm345, %v347, %v352
      %v354 = vrot.slane %v291, 1
      %v355 = vsel %vm345, %v350, %v354
      %vm358 = vcmask 523264
      %v359 = vsel %vm358, %v351, 0
      %v361 = vsel %vm358, %v355, 0
      %363 = vmatprep.subr.mxu0 0.0
      %364 = vmatpush1.msra.mxu0 %v317
      %365 = vmatprep.subr.mxu0 0.0
      %366 = vmatpush1.msra.mxu0 %v318
      %367 = vmatprep.subr.mxu0 0.0
      %368 = vmatpush1.msra.mxu0 %v319
      %369 = vmatprep.subr.mxu0 0.0
      %370 = vmatpush1.msra.mxu0 %v320
      %371 = vmatprep.subr.mxu0 0.0
      %372 = vmatpush1.msra.mxu0 %v321
      %373 = vmatprep.subr.mxu0 0.0
      %374 = vmatpush1.msra.mxu0 %v322
      %375 = vmatprep.subr.mxu0 0.0
      %376 = vmatpush1.msra.mxu0 %v323
      %377 = vmatprep.subr.mxu0 0.0
      %378 = vmatpush1.msra.mxu0 %v324
      %379 = vmatprep.subr.mxu0 0.0
      %380 = vmatpush1.msra.mxu0 %v325
      %381 = vmatprep.subr.mxu0 0.0
      %382 = vmatpush1.msra.mxu0 %v326
      %383 = vmatprep.subr.mxu0 0.0
      %384 = vmatpush1.msra.mxu0 %v327
      %385 = vmatprep.subr.mxu0 0.0
      %386 = vmatpush1.msra.mxu0 %v328
      %387 = vmatprep.subr.mxu0 0.0
      %388 = vmatpush1.msra.mxu0 %v329
      %389 = vmatprep.subr.mxu0 0.0
      %390 = vmatpush1.msra.mxu0 %v330
      %391 = vmatprep.subr.mxu0 0.0
      %392 = vmatpush1.msra.mxu0 %v331
      %393 = vmatprep.subr.mxu0 0.0
      %394 = vmatpush1.msra.mxu0 %v332
      %395 = vmatprep.subr.mxu0 0.0
      %396 = vmatpush1.msra.mxu0 %v333
      %397 = vmatprep.subr.mxu0 0.0
      %398 = vmatpush1.msra.mxu0 %v334
      %399 = vmatprep.subr.mxu0 0.0
      %400 = vmatpush1.msra.mxu0 %v335
      %401 = vmatprep.subr.mxu0 0.0
      %402 = vmatpush1.msra.mxu0 %v336
      %403 = vmatprep.subr.mxu0 0.0
      %404 = vmatpush1.msra.mxu0 %v337
      %405 = vmatprep.subr.mxu0 0.0
      %406 = vmatpush1.msra.mxu0 %v338
      %407 = vmatprep.subr.mxu0 0.0
      %408 = vmatpush1.msra.mxu0 %v339
      %409 = vmatprep.subr.mxu0 0.0
      %410 = vmatpush1.msra.mxu0 %v340
      %411 = vmatprep.subr.mxu0 0.0
      %412 = vmatpush1.msra.mxu0 0.0
      %413 = vmatprep.subr.mxu0 0.0
      %414 = vmatpush1.msra.mxu0 0.0
      %415 = vmatprep.subr.mxu0 0.0
      %416 = vmatpush1.msra.mxu0 0.0
      %417 = vmatprep.subr.mxu0 0.0
      %418 = vmatpush1.msra.mxu0 0.0
      %419 = vmatprep.subr.mxu0 0.0
      %420 = vmatpush1.msra.mxu0 0.0
      %421 = vmatprep.subr.mxu0 0.0
      %422 = vmatpush1.msra.mxu0 0.0
      %423 = vmatprep.subr.mxu0 0.0
      %424 = vmatpush1.msra.mxu0 0.0
      %425 = vmatprep.subr.mxu0 0.0
      %426 = vmatpush1.msra.mxu0 0.0
      %427 = vmatprep.mubr.f32.mxu0 %v359
      %428 = vmatmul.mubr.f32.gmra.mrb[0].mxu0 %v348
      %v429 = vpop.f32.mrb[0].mxu0
      %v430 = vadd.f32 0.0, %v429
      %v431 = vpop.f32.mrb[0].mxu0
      %432 = vmatprep.mubr.f32.mxu0 %v361
      %433 = vmatmul.mubr.f32.gmra.mrb[0].mxu0 %v353
      %v434 = vpop.f32.mrb[0].mxu0
      %v435 = vadd.f32 0.0, %v434
      %v436 = vpop.f32.mrb[0].mxu0
      %437 = vdwg.mxu0
      %v438 = vsel %vm358, %v289, 0
      %v440 = vsel %vm358, %v282, 0
      %442 = vmatprep.subr.mxu0 0.0
      %443 = vmatpush1.msra.mxu0 %v292
      %444 = vmatprep.subr.mxu0 0.0
      %445 = vmatpush1.msra.mxu0 %v293
      %446 = vmatprep.subr.mxu0 0.0
      %447 = vmatpush1.msra.mxu0 %v294
      %448 = vmatprep.subr.mxu0 0.0
      %449 = vmatpush1.msra.mxu0 %v295
      %450 = vmatprep.subr.mxu0 0.0
      %451 = vmatpush1.msra.mxu0 %v296
      %452 = vmatprep.subr.mxu0 0.0
      %453 = vmatpush1.msra.mxu0 %v297
      %454 = vmatprep.subr.mxu0 0.0
      %455 = vmatpush1.msra.mxu0 %v298
      %456 = vmatprep.subr.mxu0 0.0
      %457 = vmatpush1.msra.mxu0 %v299
      %458 = vmatprep.subr.mxu0 0.0
      %459 = vmatpush1.msra.mxu0 %v300
      %460 = vmatprep.subr.mxu0 0.0
      %461 = vmatpush1.msra.mxu0 %v301
      %462 = vmatprep.subr.mxu0 0.0
      %463 = vmatpush1.msra.mxu0 %v302
      %464 = vmatprep.subr.mxu0 0.0
      %465 = vmatpush1.msra.mxu0 %v303
      %466 = vmatprep.subr.mxu0 0.0
      %467 = vmatpush1.msra.mxu0 %v304
      %468 = vmatprep.subr.mxu0 0.0
      %469 = vmatpush1.msra.mxu0 %v305
      %470 = vmatprep.subr.mxu0 0.0
      %471 = vmatpush1.msra.mxu0 %v306
      %472 = vmatprep.subr.mxu0 0.0
      %473 = vmatpush1.msra.mxu0 %v307
      %474 = vmatprep.subr.mxu0 0.0
      %475 = vmatpush1.msra.mxu0 %v308
      %476 = vmatprep.subr.mxu0 0.0
      %477 = vmatpush1.msra.mxu0 %v309
      %478 = vmatprep.subr.mxu0 0.0
      %479 = vmatpush1.msra.mxu0 %v310
      %480 = vmatprep.subr.mxu0 0.0
      %481 = vmatpush1.msra.mxu0 %v311
      %482 = vmatprep.subr.mxu0 0.0
      %483 = vmatpush1.msra.mxu0 %v312
      %484 = vmatprep.subr.mxu0 0.0
      %485 = vmatpush1.msra.mxu0 %v313
      %486 = vmatprep.subr.mxu0 0.0
      %487 = vmatpush1.msra.mxu0 %v314
      %488 = vmatprep.subr.mxu0 0.0
      %489 = vmatpush1.msra.mxu0 %v315
      %490 = vmatprep.subr.mxu0 0.0
      %491 = vmatpush1.msra.mxu0 0.0
      %492 = vmatprep.subr.mxu0 0.0
      %493 = vmatpush1.msra.mxu0 0.0
      %494 = vmatprep.subr.mxu0 0.0
      %495 = vmatpush1.msra.mxu0 0.0
      %496 = vmatprep.subr.mxu0 0.0
      %497 = vmatpush1.msra.mxu0 0.0
      %498 = vmatprep.subr.mxu0 0.0
      %499 = vmatpush1.msra.mxu0 0.0
      %500 = vmatprep.subr.mxu0 0.0
      %501 = vmatpush1.msra.mxu0 0.0
      %502 = vmatprep.subr.mxu0 0.0
      %503 = vmatpush1.msra.mxu0 0.0
      %504 = vmatprep.subr.mxu0 0.0
      %505 = vmatpush1.msra.mxu0 0.0
      %506 = vmatprep.mubr.f32.mxu0 %v438
      %507 = vmatmul.mubr.f32.gmra.mrb[0].mxu0 %v288
      %v508 = vpop.f32.mrb[0].mxu0
      %v509 = vadd.f32 %v430, %v508
      %v510 = vpop.f32.mrb[0].mxu0
      %511 = vmatprep.mubr.f32.mxu0 %v440
      %512 = vmatmul.mubr.f32.gmra.mrb[0].mxu0 %v280
      %v513 = vpop.f32.mrb[0].mxu0
      %v514 = vadd.f32 %v435, %v513
      %v515 = vpop.f32.mrb[0].mxu0
      %516 = vdwg.mxu0
      %s517 = scalar_lea.vmem %s3, 384
      %v518 = vld [vmem:[%s517] sm:$0xff]
      %v519 = vld [vmem:[%s517 + $0x8] sm:$0xff]
      %v520 = vld [vmem:[%s517 + $0x10] sm:$0xff]
      %v521 = vld [vmem:[%s517 + $0x18] sm:$0xff]
      %v522 = vld [vmem:[%s517 + $0x20] sm:$0xff]
      %v523 = vld [vmem:[%s517 + $0x28] sm:$0xff]
      %v524 = vld [vmem:[%s517 + $0x30] sm:$0xff]
      %v525 = vld [vmem:[%s517 + $0x38] sm:$0xff]
      %v526 = vld [vmem:[%s517 + $0x40] sm:$0xff]
      %v527 = vld [vmem:[%s517 + $0x48] sm:$0xff]
      %v528 = vld [vmem:[%s517 + $0x50] sm:$0xff]
      %v529 = vld [vmem:[%s517 + $0x58] sm:$0xff]
      %v530 = vld [vmem:[%s517 + $0x60] sm:$0xff]
      %v531 = vld [vmem:[%s517 + $0x68] sm:$0xff]
      %v532 = vld [vmem:[%s517 + $0x70] sm:$0xff]
      %v533 = vld [vmem:[%s517 + $0x78] sm:$0xff]
      %v534 = vld [vmem:[%s517 + $0x80] sm:$0xff]
      %v535 = vld [vmem:[%s517 + $0x88] sm:$0xff]
      %v536 = vld [vmem:[%s517 + $0x90] sm:$0xff]
      %v537 = vld [vmem:[%s517 + $0x98] sm:$0xff]
      %v538 = vld [vmem:[%s517 + $0xa0] sm:$0xff]
      %v539 = vld [vmem:[%s517 + $0xa8] sm:$0xff]
      %v540 = vld [vmem:[%s517 + $0xb0] sm:$0xff]
      %v541 = vld [vmem:[%s517 + $0xb8] sm:$0xff]
      %vm542 = vcmask 1045504
      %v543 = vrot.slane %v288, 2
      %v544 = vrot.slane %v280, 2
      %v545 = vsel %vm542, %v543, %v544
      %v546 = vrot.slane %v289, 2
      %v547 = vrot.slane %v282, 2
      %v548 = vsel %vm542, %v546, %v547
      %v549 = vrot.slane %v290, 2
      %v550 = vsel %vm542, %v544, %v549
      %v551 = vrot.slane %v291, 2
      %v552 = vsel %vm542, %v547, %v551
      %v555 = vsel %vm358, %v548, 0
      %v557 = vsel %vm358, %v552, 0
      %559 = vmatprep.subr.mxu0 0.0
      %560 = vmatpush1.msra.mxu0 %v518
      %561 = vmatprep.subr.mxu0 0.0
      %562 = vmatpush1.msra.mxu0 %v519
      %563 = vmatprep.subr.mxu0 0.0
      %564 = vmatpush1.msra.mxu0 %v520
      %565 = vmatprep.subr.mxu0 0.0
      %566 = vmatpush1.msra.mxu0 %v521
      %567 = vmatprep.subr.mxu0 0.0
      %568 = vmatpush1.msra.mxu0 %v522
      %569 = vmatprep.subr.mxu0 0.0
      %570 = vmatpush1.msra.mxu0 %v523
      %571 = vmatprep.subr.mxu0 0.0
      %572 = vmatpush1.msra.mxu0 %v524
      %573 = vmatprep.subr.mxu0 0.0
      %574 = vmatpush1.msra.mxu0 %v525
      %575 = vmatprep.subr.mxu0 0.0
      %576 = vmatpush1.msra.mxu0 %v526
      %577 = vmatprep.subr.mxu0 0.0
      %578 = vmatpush1.msra.mxu0 %v527
      %579 = vmatprep.subr.mxu0 0.0
      %580 = vmatpush1.msra.mxu0 %v528
      %581 = vmatprep.subr.mxu0 0.0
      %582 = vmatpush1.msra.mxu0 %v529
      %583 = vmatprep.subr.mxu0 0.0
      %584 = vmatpush1.msra.mxu0 %v530
      %585 = vmatprep.subr.mxu0 0.0
      %586 = vmatpush1.msra.mxu0 %v531
      %587 = vmatprep.subr.mxu0 0.0
      %588 = vmatpush1.msra.mxu0 %v532
      %589 = vmatprep.subr.mxu0 0.0
      %590 = vmatpush1.msra.mxu0 %v533
      %591 = vmatprep.subr.mxu0 0.0
      %592 = vmatpush1.msra.mxu0 %v534
      %593 = vmatprep.subr.mxu0 0.0
      %594 = vmatpush1.msra.mxu0 %v535
      %595 = vmatprep.subr.mxu0 0.0
      %596 = vmatpush1.msra.mxu0 %v536
      %597 = vmatprep.subr.mxu0 0.0
      %598 = vmatpush1.msra.mxu0 %v537
      %599 = vmatprep.subr.mxu0 0.0
      %600 = vmatpush1.msra.mxu0 %v538
      %601 = vmatprep.subr.mxu0 0.0
      %602 = vmatpush1.msra.mxu0 %v539
      %603 = vmatprep.subr.mxu0 0.0
      %604 = vmatpush1.msra.mxu0 %v540
      %605 = vmatprep.subr.mxu0 0.0
      %606 = vmatpush1.msra.mxu0 %v541
      %607 = vmatprep.subr.mxu0 0.0
      %608 = vmatpush1.msra.mxu0 0.0
      %609 = vmatprep.subr.mxu0 0.0
      %610 = vmatpush1.msra.mxu0 0.0
      %611 = vmatprep.subr.mxu0 0.0
      %612 = vmatpush1.msra.mxu0 0.0
      %613 = vmatprep.subr.mxu0 0.0
      %614 = vmatpush1.msra.mxu0 0.0
      %615 = vmatprep.subr.mxu0 0.0
      %616 = vmatpush1.msra.mxu0 0.0
      %617 = vmatprep.subr.mxu0 0.0
      %618 = vmatpush1.msra.mxu0 0.0
      %619 = vmatprep.subr.mxu0 0.0
      %620 = vmatpush1.msra.mxu0 0.0
      %621 = vmatprep.subr.mxu0 0.0
      %622 = vmatpush1.msra.mxu0 0.0
      %623 = vmatprep.mubr.f32.mxu0 %v555
      %624 = vmatmul.mubr.f32.gmra.mrb[0].mxu0 %v545
      %v625 = vpop.f32.mrb[0].mxu0
      %v626 = vadd.f32 0.0, %v625
      %v627 = vpop.f32.mrb[0].mxu0
      %628 = vmatprep.mubr.f32.mxu0 %v557
      %629 = vmatmul.mubr.f32.gmra.mrb[0].mxu0 %v550
      %v630 = vpop.f32.mrb[0].mxu0
      %v631 = vadd.f32 0.0, %v630
      %v632 = vpop.f32.mrb[0].mxu0
      %633 = vdwg.mxu0
      %v634 = vadd.f32 %v509, %v626
      %v635 = vadd.f32 %v514, %v631
      %636 = vst.msk [vmem:[%s231] sm:$0xff] %vm358, %v634
      %637 = vst.msk [vmem:[%s231 + $0x8] sm:$0xff] %vm358, %v635
      %v638 = vsel %vm358, %v634, 0.0
      %v639 = vsel %vm358, %v635, 0.0
      %v640 = vadd.f32 %v638, %v639
      %v641 = vrot.slane %v640, 4
      %v642 = vadd.f32 %v640, %v641
      %v643 = vrot.slane %v642, 2
      %v644 = vadd.f32 %v642, %v643
      %v645 = vrot.slane %v644, 1
      %v646 = vadd.f32 %v644, %v645
      %v647 = vmul.f32 %v634, %v634
      %v648 = vmul.f32 %v635, %v635
      %v649 = vsel %vm358, %v647, 0.0
      %v650 = vsel %vm358, %v648, 0.0
      %v651 = vadd.f32 %v649, %v650
      %v652 = vrot.slane %v651, 4
      %v653 = vadd.f32 %v651, %v652
      %v654 = vrot.slane %v653, 2
      %v655 = vadd.f32 %v653, %v654
      %v656 = vrot.slane %v655, 1
      %v657 = vadd.f32 %v655, %v656
      %v658 = vsel %vm276, %v646, %v657
      %vm659 = vcmask 517120
      %660 = vst.msk [vmem:[%s235] sm:$0x3] %vm659, %v658
      %p661 = scmp.lt.s32.totalorder %s17, 1
      %s662 = scalar_select %p661, %s17, 1
      %s663 = smul.addr %s662, 2
      %s664 = smul.addr %s663, 8
      %s665 = scalar_lea.vmem %s4, %s664
      %p666 = scmp.lt.s32.totalorder %s17, 1
      %s667 = scalar_select %p666, %s17, 1
      %s668 = smul.addr %s667, 2
      %s669 = scalar_lea.vmem %s5, %s668
      // Predicated region
      $region37: #{conv_block_forward.3} parent=35 // pred_check
        %p670 = pneg %p124
      $region38: #{conv_block_forward.3} parent=35 // pred_check_branch
        %672 = sbr.rel (%p670) target = $region40
      $region39: #{conv_block_forward.3} parent=35 // pred_region
        _
      $region40: #{conv_block_forward.3} parent=35 // pred_fallthru
        _
      // Predicated region
      $region41: #{conv_block_forward.3} parent=35 // pred_check
        %p673 = pneg %p150
      $region42: #{conv_block_forward.3} parent=35 // pred_check_branch
        %675 = sbr.rel (%p673) target = $region44
      $region43: #{conv_block_forward.3} parent=35 // pred_region
        _
      $region44: #{conv_block_forward.3} parent=35 // pred_fallthru
        _
    $region36: #{conv_block_forward.3} parent=5 // pred_fallthru
      _
    %p676 = scmp.le.s32.totalorder 2, %s12
    // Predicated region
    $region45: #{conv_block_forward.3} parent=5 // pred_check
      %p677 = pneg %p676
    $region46: #{conv_block_forward.3} parent=5 // pred_check_branch
      %679 = sbr.rel (%p677) target = $region48
    $region47: #{conv_block_forward.3} parent=5 // pred_region
      %s680 = ssub.s32 %s12, 2
      // Predicated region
      $region49: #{conv_block_forward.3} parent=47 // pred_check
        %p681 = pneg %p130
      $region50: #{conv_block_forward.3} parent=47 // pred_check_branch
        %683 = sbr.rel (%p681) target = $region52
      $region51: #{conv_block_forward.3} parent=47 // pred_region
        %p684 = scmp.lt.s32.totalorder %s18, 1
        %s685 = scalar_select %p684, %s18, 1
        %s686 = smul.addr %s685, 2
        %s687 = smul.addr %s686, 8
        %s688 = scalar_lea.vmem %s4, %s687
      $region52: #{conv_block_forward.3} parent=47 // pred_fallthru
        _
      // Predicated region
      $region53: #{conv_block_forward.3} parent=47 // pred_check
        %p689 = pneg %p156
      $region54: #{conv_block_forward.3} parent=47 // pred_check_branch
        %691 = sbr.rel (%p689) target = $region56
      $region55: #{conv_block_forward.3} parent=47 // pred_region
        %p692 = scmp.lt.s32.totalorder %s18, 1
        %s693 = scalar_select %p692, %s18, 1
        %s694 = smul.addr %s693, 2
        %s695 = scalar_lea.vmem %s5, %s694
      $region56: #{conv_block_forward.3} parent=47 // pred_fallthru
        _
    $region48: #{conv_block_forward.3} parent=5 // pred_fallthru
      _
  $region6: #{conv_block_forward.3} parent=0 // loop_footer
    %s16 = sadd.s32 1, %s12
  $region7: #{conv_block_forward.3} parent=0 // loop_footer_branch
    %11 = sbr.rel target = $region3
  $region8: #{conv_block_forward.3} parent=0 // loop_exit
    _

// kernel: tile.37
$region0: #{tile.37}
  #allocation0 [shape = 's32[1]{0}', space=sflag, size = 0x4, scoped, tag = 'scoped memory for tile.37']
  %s0 = inlined_call_operand.vmem [shape: f32[4], index: 0, kind: input, shape index: {}]
  %s1 = inlined_call_operand.vmem [shape: f32[16,4], index: 1, kind: output, shape index: {}]
  // Predicated region
  $region2: #{tile.37} parent=0 // pred_check
    _
  $region3: #{tile.37} parent=0 // pred_check_branch
    %3 = sbr.rel (0) target = $region5
  $region4: #{tile.37} parent=0 // pred_region
    _
  $region5: #{tile.37} parent=0 // pred_fallthru
    _
  %v4 = vld [vmem:[%s0] ss:$0 sm:$0xff]
  %5 = vst [vmem:[%s1] sm:$0xff] %v4
  %s6 = scalar_lea.vmem %s1, 8
  %7 = vst [vmem:[%s6] sm:$0xff] %v4

// kernel: tile.38
$region0: #{tile.38}
  %s0 = inlined_call_operand.vmem [shape: f32[16,4], index: 0, kind: input, shape index: {}]
  %s1 = inlined_call_operand.vmem [shape: f32[1,64], index: 1, kind: output, shape index: {}]
  $region1: #{tile.38} parent=0
    #allocation0 [shape = 'u8[4096]{0}', space=vmem, size = 0x1000, scoped, tag = 'scoped mem for output reshape']
    %v2 = vld [vmem:[%s0] sm:$0x1]
    %vm3 = vcmask 31744
    %4 = vst.msk [vmem:[#allocation0] sm:$0x1] %vm3, %v2
    %s5 = scalar_lea.vmem %s0, 15
    %v6 = vld [vmem:[%s5] sm:$0x1]
    %7 = vrot.lane.b32.xlu0 %v6, 60
    %v8 = vpop.permute.xlu0 %7
    %vm9 = vcmask 523744
    %10 = vst.msk [vmem:[#allocation0] sm:$0x1] %vm9, %v8
    %s11 = scalar_lea.vmem %s0, 14
    %v12 = vld [vmem:[%s11] sm:$0x1]
    %13 = vrot.lane.b32.xlu0 %v12, 56
    %v14 = vpop.permute.xlu0 %13
    %vm15 = vcmask 490944
    %16 = vst.msk [vmem:[#allocation0] sm:$0x1] %vm15, %v14
    %s17 = scalar_lea.vmem %s0, 13
    %v18 = vld [vmem:[%s17] sm:$0x1]
    %19 = vrot.lane.b32.xlu0 %v18, 52
    %v20 = vpop.permute.xlu0 %19
    %vm21 = vcmask 458144
    %22 = vst.msk [vmem:[#allocation0] sm:$0x1] %vm21, %v20
    %s23 = scalar_lea.vmem %s0, 12
    %v24 = vld [vmem:[%s23] sm:$0x1]
    %25 = vrot.lane.b32.xlu0 %v24, 48
    %v26 = vpop.permute.xlu0 %25
    %vm27 = vcmask 425344
    %28 = vst.msk [vmem:[#allocation0] sm:$0x1] %vm27, %v26
    %s29 = scalar_lea.vmem %s0, 11
    %v30 = vld [vmem:[%s29] sm:$0x1]
    %31 = vrot.lane.b32.xlu0 %v30, 44
    %v32 = vpop.permute.xlu0 %31
    %vm33 = vcmask 392544
    %34 = vst.msk [vmem:[#allocation0] sm:$0x1] %vm33, %v32
    %s35 = scalar_lea.vmem %s0, 10
    %v36 = vld [vmem:[%s35] sm:$0x1]
    %37 = vrot.lane.b32.xlu0 %v36, 40
    %v38 = vpop.permute.xlu0 %37
    %vm39 = vcmask 359744
    %40 = vst.msk [vmem:[#allocation0] sm:$0x1] %vm39, %v38
    %s41 = scalar_lea.vmem %s0, 9
    %v42 = vld [vmem:[%s41] sm:$0x1]
    %43 = vrot.lane.b32.xlu0 %v42, 36
    %v44 = vpop.permute.xlu0 %43
    %vm45 = vcmask 326944
    %46 = vst.msk [vmem:[#allocation0] sm:$0x1] %vm45, %v44
    %s47 = scalar_lea.vmem %s0, 8
    %v48 = vld [vmem:[%s47] sm:$0x1]
    %49 = vrot.lane.b32.xlu0 %v48, 32
    %v50 = vpop.permute.xlu0 %49
    %vm51 = vcmask 294144
    %52 = vst.msk [vmem:[#allocation0] sm:$0x1] %vm51, %v50
    %s53 = scalar_lea.vmem %s0, 7
    %v54 = vld [vmem:[%s53] sm:$0x1]
    %55 = vrot.lane.b32.xlu0 %v54, 28
    %v56 = vpop.permute.xlu0 %55
    %vm57 = vcmask 261344
    %58 = vst.msk [vmem:[#allocation0] sm:$0x1] %vm57, %v56
    %s59 = scalar_lea.vmem %s0, 6
    %v60 = vld [vmem:[%s59] sm:$0x1]
    %61 = vrot.lane.b32.xlu0 %v60, 24
    %v62 = vpop.permute.xlu0 %61
    %vm63 = vcmask 228544
    %64 = vst.msk [vmem:[#allocation0] sm:$0x1] %vm63, %v62
    %s65 = scalar_lea.vmem %s0, 5
    %v66 = vld [vmem:[%s65] sm:$0x1]
    %67 = vrot.lane.b32.xlu0 %v66, 20
    %v68 = vpop.permute.xlu0 %67
    %vm69 = vcmask 195744
    %70 = vst.msk [vmem:[#allocation0] sm:$0x1] %vm69, %v68
    %s71 = scalar_lea.vmem %s0, 4
    %v72 = vld [vmem:[%s71] sm:$0x1]
    %73 = vrot.lane.b32.xlu0 %v72, 16
    %v74 = vpop.permute.xlu0 %73
    %vm75 = vcmask 162944
    %76 = vst.msk [vmem:[#allocation0] sm:$0x1] %vm75, %v74
    %s77 = scalar_lea.vmem %s0, 3
    %v78 = vld [vmem:[%s77] sm:$0x1]
    %79 = vrot.lane.b32.xlu0 %v78, 12
    %v80 = vpop.permute.xlu0 %79
    %vm81 = vcmask 130144
    %82 = vst.msk [vmem:[#allocation0] sm:$0x1] %vm81, %v80
    %s83 = scalar_lea.vmem %s0, 2
    %v84 = vld [vmem:[%s83] sm:$0x1]
    %85 = vrot.lane.b32.xlu0 %v84, 8
    %v86 = vpop.permute.xlu0 %85
    %vm87 = vcmask 97344
    %88 = vst.msk [vmem:[#allocation0] sm:$0x1] %vm87, %v86
    %s89 = scalar_lea.vmem %s0, 1
    %v90 = vld [vmem:[%s89] sm:$0x1]
    %91 = vrot.lane.b32.xlu0 %v90, 4
    %v92 = vpop.permute.xlu0 %91
    %vm93 = vcmask 64544
    %94 = vst.msk [vmem:[#allocation0] sm:$0x1] %vm93, %v92
    %s96 = sshllo.u32 0, 1
    %v98 = vld [vmem:[#allocation0] sm:%s96]
    %s99 = sshllo.u32 0, 1
    %100 = vst [vmem:[%s1] sm:%s99] %v98

// kernel: conv_block_forward.4
$region0: #{conv_block_forward.4}
  #allocation0 [shape = 'u32[]', space=smem, size = 0x4, offset = 0x4, fixed_abs, tag = 'smem constant byte address 0x4 - core index']
  #allocation1 [shape = 'u32[144,128]{1,0:T(1,128)}', space=vmem, size = 0x12000, scoped, tag = 'internal scratch']
  %s0 = inlined_call_operand.vmem [shape: f32[2,16,64], index: 0, kind: input, shape index: {}]
  %s1 = inlined_call_operand.vmem [shape: f32[1,64], index: 1, kind: input, shape index: {}]
  %s2 = inlined_call_operand.vmem [shape: f32[1,64], index: 2, kind: input, shape index: {}]
  %s3 = inlined_call_operand.vmem [shape: f32[5,64,128], index: 3, kind: input, shape index: {}]
  %s4 = inlined_call_operand.vmem [shape: f32[2,16,128], index: 4, kind: output, shape index: {0}]
  %s5 = inlined_call_operand.vmem [shape: f32[2,2,128], index: 5, kind: output, shape index: {1}]
  %6 = xla_tuple %s4, %s5
  %s7 = sld [smem:[#allocation0]]
  $region57: #{conv_block_forward.4} parent=0
    _
  %s9 = ssub.s32 1, %s7
  %s10 = scalar_select 0, %s9, %s7
  loop: start=0, step=1, limit=4
  $region2: #{conv_block_forward.4} parent=0 // loop_pre_header
    _
  $region3: #{conv_block_forward.4} parent=0 // loop_header
    %s12 = sphi 0, %s16
    %p13 = scmp.ge.s32.totalorder %s12, 4
    %s22 = sphi 0, %s24
    %s25 = sphi 0, %s22
    %s26 = sphi 0, %s25
    %s42 = sphi 0, %s26
    %s46 = sphi 0, %s46
    %s48 = sphi 0, %s46
    %s49 = sphi 0, %s48
    %s63 = sphi 0, %s49
    %s67 = sphi 0, %s67
    %s69 = sphi 0, %s67
    %s70 = sphi 0, %s69
    %s84 = sphi 0, %s70
    %s88 = sphi 0, %s88
    %s90 = sphi 0, %s88
    %s91 = sphi 0, %s90
    %s105 = sphi 0, %s91
    %s111 = sphi 0, %s113
    %s114 = sphi 0, %s111
    %s115 = sphi 0, %s114
    %s131 = sphi 0, %s115
    %s137 = sphi 0, %s139
    %s140 = sphi 0, %s137
    %s141 = sphi 0, %s140
    %s157 = sphi 0, %s141
  $region4: #{conv_block_forward.4} parent=0 // loop_header_branch
    %15 = sbr.rel (%p13) target = $region8
  $region5: #{conv_block_forward.4} parent=0 // loop_body
    %s17 = ssub.s32 %s12, 1
    %s18 = ssub.s32 %s12, 2
    %s19 = sadd.s32 %s12, 1
    %s20 = ssub.s32 %s12, %s19
    %p21 = scmp.eq.s32.totalorder %s20, 0
    %s23 = sadd.s32 %s22, 1
    %s24 = scalar_select %p21, %s22, %s23
    %p27 = pneg %p21
    %p28 = scmp.eq.s32.totalorder %s12, 1
    %p29 = por %p27, %p28
    %p30 = scmp.ne.s32.totalorder %s22, %s25
    %p31 = scmp.eq.s32.totalorder %s12, 0
    %p32 = por %p30, %p31
    %p33 = scmp.ne.s32.totalorder %s22, %s25
    %p34 = scmp.eq.s32.totalorder %s17, 1
    %p35 = por %p33, %p34
    %p36 = scmp.ne.s32.totalorder %s25, %s26
    %p37 = scmp.eq.s32.totalorder %s17, 0
    %p38 = por %p36, %p37
    %p39 = scmp.ne.s32.totalorder %s25, %s26
    %p40 = scmp.eq.s32.totalorder %s18, 1
    %p41 = por %p39, %p40
    %p43 = scmp.ne.s32.totalorder %s26, %s42
    %p44 = scmp.eq.s32.totalorder %s18, 0
    %p45 = por %p43, %p44
    %s47 = sadd.s32 %s46, 1
    %p50 = scmp.eq.s32.totalorder %s12, 1
    %p51 = scmp.ne.s32.totalorder %s46, %s48
    %p52 = scmp.eq.s32.totalorder %s12, 0
    %p53 = por %p51, %p52
    %p54 = scmp.ne.s32.totalorder %s46, %s48
    %p55 = scmp.eq.s32.totalorder %s17, 1
    %p56 = por %p54, %p55
    %p57 = scmp.ne.s32.totalorder %s48, %s49
    %p58 = scmp.eq.s32.totalorder %s17, 0
    %p59 = por %p57, %p58
    %p60 = scmp.ne.s32.totalorder %s48, %s49
    %p61 = scmp.eq.s32.totalorder %s18, 1
    %p62 = por %p60, %p61
    %p64 = scmp.ne.s32.totalorder %s49, %s63
    %p65 = scmp.eq.s32.totalorder %s18, 0
    %p66 = por %p64, %p65
    %s68 = sadd.s32 %s67, 1
    %p71 = scmp.eq.s32.totalorder %s12, 1
    %p72 = scmp.ne.s32.totalorder %s67, %s69
    %p73 = scmp.eq.s32.totalorder %s12, 0
    %p74 = por %p72, %p73
    %p75 = scmp.ne.s32.totalorder %s67, %s69
    %p76 = scmp.eq.s32.totalorder %s17, 1
    %p77 = por %p75, %p76
    %p78 = scmp.ne.s32.totalorder %s69, %s70
    %p79 = scmp.eq.s32.totalorder %s17, 0
    %p80 = por %p78, %p79
    %p81 = scmp.ne.s32.totalorder %s69, %s70
    %p82 = scmp.eq.s32.totalorder %s18, 1
    %p83 = por %p81, %p82
    %p85 = scmp.ne.s32.totalorder %s70, %s84
    %p86 = scmp.eq.s32.totalorder %s18, 0
    %p87 = por %p85, %p86
    %s89 = sadd.s32 %s88, 1
    %p92 = scmp.eq.s32.totalorder %s12, 1
    %p93 = scmp.ne.s32.totalorder %s88, %s90
    %p94 = scmp.eq.s32.totalorder %s12, 0
    %p95 = por %p93, %p94
    %p96 = scmp.ne.s32.totalorder %s88, %s90
    %p97 = scmp.eq.s32.totalorder %s17, 1
    %p98 = por %p96, %p97
    %p99 = scmp.ne.s32.totalorder %s90, %s91
    %p100 = scmp.eq.s32.totalorder %s17, 0
    %p101 = por %p99, %p100
    %p102 = scmp.ne.s32.totalorder %s90, %s91
    %p103 = scmp.eq.s32.totalorder %s18, 1
    %p104 = por %p102, %p103
    %p106 = scmp.ne.s32.totalorder %s91, %s105
    %p107 = scmp.eq.s32.totalorder %s18, 0
    %p108 = por %p106, %p107
    %s109 = ssub.s32 %s12, %s19
    %p110 = scmp.eq.s32.totalorder %s109, 0
    %s112 = sadd.s32 %s111, 1
    %s113 = scalar_select %p110, %s111, %s112
    %p116 = pneg %p110
    %p117 = scmp.eq.s32.totalorder %s12, 1
    %p118 = por %p116, %p117
    %p119 = scmp.ne.s32.totalorder %s111, %s114
    %p120 = scmp.eq.s32.totalorder %s12, 0
    %p121 = por %p119, %p120
    %p122 = scmp.ne.s32.totalorder %s111, %s114
    %p123 = scmp.eq.s32.totalorder %s17, 1
    %p124 = por %p122, %p123
    %p125 = scmp.ne.s32.totalorder %s114, %s115
    %p126 = scmp.eq.s32.totalorder %s17, 0
    %p127 = por %p125, %p126
    %p128 = scmp.ne.s32.totalorder %s114, %s115
    %p129 = scmp.eq.s32.totalorder %s18, 1
    %p130 = por %p128, %p129
    %p132 = scmp.ne.s32.totalorder %s115, %s131
    %p133 = scmp.eq.s32.totalorder %s18, 0
    %p134 = por %p132, %p133
    %s135 = ssub.s32 %s12, %s19
    %p136 = scmp.eq.s32.totalorder %s135, 0
    %s138 = sadd.s32 %s137, 1
    %s139 = scalar_select %p136, %s137, %s138
    %p142 = pneg %p136
    %p143 = scmp.eq.s32.totalorder %s12, 1
    %p144 = por %p142, %p143
    %p145 = scmp.ne.s32.totalorder %s137, %s140
    %p146 = scmp.eq.s32.totalorder %s12, 0
    %p147 = por %p145, %p146
    %p148 = scmp.ne.s32.totalorder %s137, %s140
    %p149 = scmp.eq.s32.totalorder %s17, 1
    %p150 = por %p148, %p149
    %p151 = scmp.ne.s32.totalorder %s140, %s141
    %p152 = scmp.eq.s32.totalorder %s17, 0
    %p153 = por %p151, %p152
    %p154 = scmp.ne.s32.totalorder %s140, %s141
    %p155 = scmp.eq.s32.totalorder %s18, 1
    %p156 = por %p154, %p155
    %p158 = scmp.ne.s32.totalorder %s141, %s157
    %p159 = scmp.eq.s32.totalorder %s18, 0
    %p160 = por %p158, %p159
    %p161 = scmp.le.s32.totalorder 1, %s12
    %p162 = scmp.lt.s32.totalorder %s12, 3
    %p163 = pnand %p161, %p162
    %p164 = pneg %p163
    // Predicated region
    $region9: #{conv_block_forward.4} parent=5 // pred_check
      _
    $region10: #{conv_block_forward.4} parent=5 // pred_check_branch
      %166 = sbr.rel (%p163) target = $region12
    $region11: #{conv_block_forward.4} parent=5 // pred_region
      %s167 = ssub.s32 %s12, 1
      // Predicated region
      $region13: #{conv_block_forward.4} parent=11 // pred_check
        %p168 = pneg %p59
      $region14: #{conv_block_forward.4} parent=11 // pred_check_branch
        %170 = sbr.rel (%p168) target = $region16
      $region15: #{conv_block_forward.4} parent=11 // pred_region
        _
      $region16: #{conv_block_forward.4} parent=11 // pred_fallthru
        _
      // Predicated region
      $region17: #{conv_block_forward.4} parent=11 // pred_check
        %p171 = pneg %p80
      $region18: #{conv_block_forward.4} parent=11 // pred_check_branch
        %173 = sbr.rel (%p171) target = $region20
      $region19: #{conv_block_forward.4} parent=11 // pred_region
        _
      $region20: #{conv_block_forward.4} parent=11 // pred_fallthru
        _
      // Predicated region
      $region21: #{conv_block_forward.4} parent=11 // pred_check
        %p174 = pneg %p101
      $region22: #{conv_block_forward.4} parent=11 // pred_check_branch
        %176 = sbr.rel (%p174) target = $region24
      $region23: #{conv_block_forward.4} parent=11 // pred_region
        _
      $region24: #{conv_block_forward.4} parent=11 // pred_fallthru
        _
    $region12: #{conv_block_forward.4} parent=5 // pred_fallthru
      _
    %p177 = scmp.lt.s32.totalorder %s12, 2
    // Predicated region
    $region25: #{conv_block_forward.4} parent=5 // pred_check
      %p178 = pneg %p177
    $region26: #{conv_block_forward.4} parent=5 // pred_check_branch
      %180 = sbr.rel (%p178) target = $region28
    $region27: #{conv_block_forward.4} parent=5 // pred_region
      // Predicated region
      $region29: #{conv_block_forward.4} parent=27 // pred_check
        %p181 = pneg %p32
      $region30: #{conv_block_forward.4} parent=27 // pred_check_branch
        %183 = sbr.rel (%p181) target = $region32
      $region31: #{conv_block_forward.4} parent=27 // pred_region
        %p184 = scmp.lt.s32.totalorder %s12, 1
        %s185 = scalar_select %p184, %s12, 1
        %s186 = smul.addr %s185, 2
        %s187 = smul.addr %s186, 8
        %s188 = scalar_lea.vmem %s0, %s187
      $region32: #{conv_block_forward.4} parent=27 // pred_fallthru
        _
    $region28: #{conv_block_forward.4} parent=5 // pred_fallthru
      _
    %p189 = scmp.le.s32.totalorder 1, %s12
    %p190 = scmp.lt.s32.totalorder %s12, 3
    %p191 = pnand %p189, %p190
    %p192 = pneg %p191
    // Predicated region
    $region33: #{conv_block_forward.4} parent=5 // pred_check
      _
    $region34: #{conv_block_forward.4} parent=5 // pred_check_branch
      %194 = sbr.rel (%p191) target = $region36
    $region35: #{conv_block_forward.4} parent=5 // pred_region
      %s195 = ssub.s32 %s12, 1
      %p196 = scmp.lt.s32.totalorder %s17, 1
      %s197 = scalar_select %p196, %s17, 1
      %s198 = smul.addr %s197, 2
      %s199 = smul.addr %s198, 8
      %s200 = scalar_lea.vmem %s0, %s199
      %p201 = pneg %p38
      %p202 = pneg %p35
      %p203 = pneg %p59
      %p204 = pneg %p56
      %p205 = pneg %p80
      %p206 = pneg %p77
      %p207 = pneg %p101
      %p208 = pneg %p98
      %p209 = pneg %p127
      %p210 = pneg %p124
      %p211 = scmp.lt.s32.totalorder %s17, 1
      %s212 = scalar_select %p211, %s17, 1
      %s213 = smul.addr %s212, 2
      %s214 = smul.addr %s213, 8
      %s215 = scalar_lea.vmem %s4, %s214
      %p216 = pneg %p153
      %p217 = pneg %p150
      %p218 = scmp.lt.s32.totalorder %s17, 1
      %s219 = scalar_select %p218, %s17, 1
      %s220 = smul.addr %s219, 2
      %s221 = scalar_lea.vmem %s5, %s220
      %p222 = scmp.lt.s32.totalorder %s17, 1
      %s223 = scalar_select %p222, %s17, 1
      %s224 = smul.addr %s223, 2
      %s225 = smul.addr %s224, 8
      %s226 = scalar_lea.vmem %s0, %s225
      %p227 = scmp.lt.s32.totalorder %s17, 1
      %s228 = scalar_select %p227, %s17, 1
      %s229 = smul.addr %s228, 2
      %s230 = smul.addr %s229, 8
      %s231 = scalar_lea.vmem %s4, %s230
      %p232 = scmp.lt.s32.totalorder %s17, 1
      %s233 = scalar_select %p232, %s17, 1
      %s234 = smul.addr %s233, 2
      %s235 = scalar_lea.vmem %s5, %s234
      %v236 = vld [vmem:[%s226] sm:$0xff]
      %v237 = vld [vmem:[%s226 + $0x8] sm:$0xff]
      %v238 = vld [vmem:[%s1] sm:$0x1]
      %v240 = vlaneseq
      %v241 = vshrl.u32 %v240, 7
      %v242 = vsub.s32 0, %v241
      %v243 = vrot.slane %v238, %v242
      %v245 = vmul.f32 %v236, %v243
      %v246 = vmul.f32 %v237, %v243
      %v247 = vld [vmem:[%s2] sm:$0x1]
      %v249 = vlaneseq
      %v250 = vshrl.u32 %v249, 7
      %v251 = vsub.s32 0, %v250
      %v252 = vrot.slane %v247, %v251
      %v254 = vadd.f32 %v245, %v252
      %v255 = vadd.f32 %v246, %v252
      %vm258 = vcmask 1041408
      %v259 = vrot.slane %v254, 6
      %v260 = vrot.slane %v255, 6
      %v261 = vsel %vm258, %v259, %v260
      %v264 = vsel %vm258, 0.0, %v259
      %v265 = vsel %vm258, %v260, 0.0
      %v266 = vld [vmem:[%s3] sm:$0xff]
      %v267 = vld [vmem:[%s3 + $0x8] sm:$0xff]
      %v268 = vld [vmem:[%s3 + $0x10] sm:$0xff]
      %v269 = vld [vmem:[%s3 + $0x18] sm:$0xff]
      %v270 = vld [vmem:[%s3 + $0x20] sm:$0xff]
      %v271 = vld [vmem:[%s3 + $0x28] sm:$0xff]
      %v272 = vld [vmem:[%s3 + $0x30] sm:$0xff]
      %v273 = vld [vmem:[%s3 + $0x38] sm:$0xff]
      %s274 = scalar_lea.vmem %s3, 64
      %v275 = vld [vmem:[%s274] sm:$0xff]
      %v276 = vld [vmem:[%s274 + $0x8] sm:$0xff]
      %v277 = vld [vmem:[%s274 + $0x10] sm:$0xff]
      %v278 = vld [vmem:[%s274 + $0x18] sm:$0xff]
      %v279 = vld [vmem:[%s274 + $0x20] sm:$0xff]
      %v280 = vld [vmem:[%s274 + $0x28] sm:$0xff]
      %v281 = vld [vmem:[%s274 + $0x30] sm:$0xff]
      %v282 = vld [vmem:[%s274 + $0x38] sm:$0xff]
      %vm285 = vcmask 1046528
      %v286 = vrot.slane %v264, 1
      %v287 = vrot.slane %v261, 1
      %v288 = vsel %vm285, %v286, %v287
      %v289 = vrot.slane %v265, 1
      %v290 = vsel %vm285, %v287, %v289
      %vm291 = vcmask 523264
      %v292 = vsel %vm291, %v288, 0
      %v294 = vsel %vm291, %v290, 0
      %296 = vmatprep.subr.mxu0 0.0
      %297 = vmatpush1.msra.mxu0 %v275
      %298 = vmatprep.subr.mxu0 0.0
      %299 = vmatpush1.msra.mxu0 %v276
      %300 = vmatprep.subr.mxu0 0.0
      %301 = vmatpush1.msra.mxu0 %v277
      %302 = vmatprep.subr.mxu0 0.0
      %303 = vmatpush1.msra.mxu0 %v278
      %304 = vmatprep.subr.mxu0 0.0
      %305 = vmatpush1.msra.mxu0 %v279
      %306 = vmatprep.subr.mxu0 0.0
      %307 = vmatpush1.msra.mxu0 %v280
      %308 = vmatprep.subr.mxu0 0.0
      %309 = vmatpush1.msra.mxu0 %v281
      %310 = vmatprep.subr.mxu0 0.0
      %311 = vmatpush1.msra.mxu0 %v282
      %312 = vmatprep.subr.mxu0 0.0
      %313 = vmatpush1.msra.mxu0 0.0
      %314 = vmatprep.subr.mxu0 0.0
      %315 = vmatpush1.msra.mxu0 0.0
      %316 = vmatprep.subr.mxu0 0.0
      %317 = vmatpush1.msra.mxu0 0.0
      %318 = vmatprep.subr.mxu0 0.0
      %319 = vmatpush1.msra.mxu0 0.0
      %320 = vmatprep.subr.mxu0 0.0
      %321 = vmatpush1.msra.mxu0 0.0
      %322 = vmatprep.subr.mxu0 0.0
      %323 = vmatpush1.msra.mxu0 0.0
      %324 = vmatprep.subr.mxu0 0.0
      %325 = vmatpush1.msra.mxu0 0.0
      %326 = vmatprep.subr.mxu0 0.0
      %327 = vmatpush1.msra.mxu0 0.0
      %328 = vmatprep.subr.mxu0 0.0
      %329 = vmatpush1.msra.mxu0 0.0
      %330 = vmatprep.subr.mxu0 0.0
      %331 = vmatpush1.msra.mxu0 0.0
      %332 = vmatprep.subr.mxu0 0.0
      %333 = vmatpush1.msra.mxu0 0.0
      %334 = vmatprep.subr.mxu0 0.0
      %335 = vmatpush1.msra.mxu0 0.0
      %336 = vmatprep.subr.mxu0 0.0
      %337 = vmatpush1.msra.mxu0 0.0
      %338 = vmatprep.subr.mxu0 0.0
      %339 = vmatpush1.msra.mxu0 0.0
      %340 = vmatprep.subr.mxu0 0.0
      %341 = vmatpush1.msra.mxu0 0.0
      %342 = vmatprep.subr.mxu0 0.0
      %343 = vmatpush1.msra.mxu0 0.0
      %344 = vmatprep.subr.mxu0 0.0
      %345 = vmatpush1.msra.mxu0 0.0
      %346 = vmatprep.subr.mxu0 0.0
      %347 = vmatpush1.msra.mxu0 0.0
      %348 = vmatprep.subr.mxu0 0.0
      %349 = vmatpush1.msra.mxu0 0.0
      %350 = vmatprep.subr.mxu0 0.0
      %351 = vmatpush1.msra.mxu0 0.0
      %352 = vmatprep.subr.mxu0 0.0
      %353 = vmatpush1.msra.mxu0 0.0
      %354 = vmatprep.subr.mxu0 0.0
      %355 = vmatpush1.msra.mxu0 0.0
      %356 = vmatprep.subr.mxu0 0.0
      %357 = vmatpush1.msra.mxu0 0.0
      %358 = vmatprep.subr.mxu0 0.0
      %359 = vmatpush1.msra.mxu0 0.0
      %360 = vmatprep.mubr.f32.mxu0 0.0
      %361 = vmatmul.mubr.f32.gmra.mrb[0].mxu0 %v292
      %v362 = vpop.f32.mrb[0].mxu0
      %v363 = vadd.f32 0.0, %v362
      %v364 = vpop.f32.mrb[0].mxu0
      %365 = vmatprep.mubr.f32.mxu0 0.0
      %366 = vmatmul.mubr.f32.gmra.mrb[0].mxu0 %v294
      %v367 = vpop.f32.mrb[0].mxu0
      %v368 = vadd.f32 0.0, %v367
      %v369 = vpop.f32.mrb[0].mxu0
      %370 = vdwg.mxu0
      %v371 = vsel %vm291, %v264, 0
      %v373 = vsel %vm291, %v261, 0
      %375 = vmatprep.subr.mxu0 0.0
      %376 = vmatpush1.msra.mxu0 %v266
      %377 = vmatprep.subr.mxu0 0.0
      %378 = vmatpush1.msra.mxu0 %v267
      %379 = vmatprep.subr.mxu0 0.0
      %380 = vmatpush1.msra.mxu0 %v268
      %381 = vmatprep.subr.mxu0 0.0
      %382 = vmatpush1.msra.mxu0 %v269
      %383 = vmatprep.subr.mxu0 0.0
      %384 = vmatpush1.msra.mxu0 %v270
      %385 = vmatprep.subr.mxu0 0.0
      %386 = vmatpush1.msra.mxu0 %v271
      %387 = vmatprep.subr.mxu0 0.0
      %388 = vmatpush1.msra.mxu0 %v272
      %389 = vmatprep.subr.mxu0 0.0
      %390 = vmatpush1.msra.mxu0 %v273
      %391 = vmatprep.subr.mxu0 0.0
      %392 = vmatpush1.msra.mxu0 0.0
      %393 = vmatprep.subr.mxu0 0.0
      %394 = vmatpush1.msra.mxu0 0.0
      %395 = vmatprep.subr.mxu0 0.0
      %396 = vmatpush1.msra.mxu0 0.0
      %397 = vmatprep.subr.mxu0 0.0
      %398 = vmatpush1.msra.mxu0 0.0
      %399 = vmatprep.subr.mxu0 0.0
      %400 = vmatpush1.msra.mxu0 0.0
      %401 = vmatprep.subr.mxu0 0.0
      %402 = vmatpush1.msra.mxu0 0.0
      %403 = vmatprep.subr.mxu0 0.0
      %404 = vmatpush1.msra.mxu0 0.0
      %405 = vmatprep.subr.mxu0 0.0
      %406 = vmatpush1.msra.mxu0 0.0
      %407 = vmatprep.subr.mxu0 0.0
      %408 = vmatpush1.msra.mxu0 0.0
      %409 = vmatprep.subr.mxu0 0.0
      %410 = vmatpush1.msra.mxu0 0.0
      %411 = vmatprep.subr.mxu0 0.0
      %412 = vmatpush1.msra.mxu0 0.0
      %413 = vmatprep.subr.mxu0 0.0
      %414 = vmatpush1.msra.mxu0 0.0
      %415 = vmatprep.subr.mxu0 0.0
      %416 = vmatpush1.msra.mxu0 0.0
      %417 = vmatprep.subr.mxu0 0.0
      %418 = vmatpush1.msra.mxu0 0.0
      %419 = vmatprep.subr.mxu0 0.0
      %420 = vmatpush1.msra.mxu0 0.0
      %421 = vmatprep.subr.mxu0 0.0
      %422 = vmatpush1.msra.mxu0 0.0
      %423 = vmatprep.subr.mxu0 0.0
      %424 = vmatpush1.msra.mxu0 0.0
      %425 = vmatprep.subr.mxu0 0.0
      %426 = vmatpush1.msra.mxu0 0.0
      %427 = vmatprep.subr.mxu0 0.0
      %428 = vmatpush1.msra.mxu0 0.0
      %429 = vmatprep.subr.mxu0 0.0
      %430 = vmatpush1.msra.mxu0 0.0
      %431 = vmatprep.subr.mxu0 0.0
      %432 = vmatpush1.msra.mxu0 0.0
      %433 = vmatprep.subr.mxu0 0.0
      %434 = vmatpush1.msra.mxu0 0.0
      %435 = vmatprep.subr.mxu0 0.0
      %436 = vmatpush1.msra.mxu0 0.0
      %437 = vmatprep.subr.mxu0 0.0
      %438 = vmatpush1.msra.mxu0 0.0
      %439 = vmatprep.mubr.f32.mxu0 0.0
      %440 = vmatmul.mubr.f32.gmra.mrb[0].mxu0 %v371
      %v441 = vpop.f32.mrb[0].mxu0
      %v442 = vadd.f32 %v363, %v441
      %v443 = vpop.f32.mrb[0].mxu0
      %444 = vmatprep.mubr.f32.mxu0 0.0
      %445 = vmatmul.mubr.f32.gmra.mrb[0].mxu0 %v373
      %v446 = vpop.f32.mrb[0].mxu0
      %v447 = vadd.f32 %v368, %v446
      %v448 = vpop.f32.mrb[0].mxu0
      %449 = vdwg.mxu0
      %s450 = scalar_lea.vmem %s3, 128
      %v451 = vld [vmem:[%s450] sm:$0xff]
      %v452 = vld [vmem:[%s450 + $0x8] sm:$0xff]
      %v453 = vld [vmem:[%s450 + $0x10] sm:$0xff]
      %v454 = vld [vmem:[%s450 + $0x18] sm:$0xff]
      %v455 = vld [vmem:[%s450 + $0x20] sm:$0xff]
      %v456 = vld [vmem:[%s450 + $0x28] sm:$0xff]
      %v457 = vld [vmem:[%s450 + $0x30] sm:$0xff]
      %v458 = vld [vmem:[%s450 + $0x38] sm:$0xff]
      %vm459 = vcmask 1045504
      %v460 = vrot.slane %v264, 2
      %v461 = vrot.slane %v261, 2
      %v462 = vsel %vm459, %v460, %v461
      %v463 = vrot.slane %v265, 2
      %v464 = vsel %vm459, %v461, %v463
      %v465 = vsel %vm291, %v462, 0
      %v467 = vsel %vm291, %v464, 0
      %469 = vmatprep.subr.mxu0 0.0
      %470 = vmatpush1.msra.mxu0 %v451
      %471 = vmatprep.subr.mxu0 0.0
      %472 = vmatpush1.msra.mxu0 %v452
      %473 = vmatprep.subr.mxu0 0.0
      %474 = vmatpush1.msra.mxu0 %v453
      %475 = vmatprep.subr.mxu0 0.0
      %476 = vmatpush1.msra.mxu0 %v454
      %477 = vmatprep.subr.mxu0 0.0
      %478 = vmatpush1.msra.mxu0 %v455
      %479 = vmatprep.subr.mxu0 0.0
      %480 = vmatpush1.msra.mxu0 %v456
      %481 = vmatprep.subr.mxu0 0.0
      %482 = vmatpush1.msra.mxu0 %v457
      %483 = vmatprep.subr.mxu0 0.0
      %484 = vmatpush1.msra.mxu0 %v458
      %485 = vmatprep.subr.mxu0 0.0
      %486 = vmatpush1.msra.mxu0 0.0
      %487 = vmatprep.subr.mxu0 0.0
      %488 = vmatpush1.msra.mxu0 0.0
      %489 = vmatprep.subr.mxu0 0.0
      %490 = vmatpush1.msra.mxu0 0.0
      %491 = vmatprep.subr.mxu0 0.0
      %492 = vmatpush1.msra.mxu0 0.0
      %493 = vmatprep.subr.mxu0 0.0
      %494 = vmatpush1.msra.mxu0 0.0
      %495 = vmatprep.subr.mxu0 0.0
      %496 = vmatpush1.msra.mxu0 0.0
      %497 = vmatprep.subr.mxu0 0.0
      %498 = vmatpush1.msra.mxu0 0.0
      %499 = vmatprep.subr.mxu0 0.0
      %500 = vmatpush1.msra.mxu0 0.0
      %501 = vmatprep.subr.mxu0 0.0
      %502 = vmatpush1.msra.mxu0 0.0
      %503 = vmatprep.subr.mxu0 0.0
      %504 = vmatpush1.msra.mxu0 0.0
      %505 = vmatprep.subr.mxu0 0.0
      %506 = vmatpush1.msra.mxu0 0.0
      %507 = vmatprep.subr.mxu0 0.0
      %508 = vmatpush1.msra.mxu0 0.0
      %509 = vmatprep.subr.mxu0 0.0
      %510 = vmatpush1.msra.mxu0 0.0
      %511 = vmatprep.subr.mxu0 0.0
      %512 = vmatpush1.msra.mxu0 0.0
      %513 = vmatprep.subr.mxu0 0.0
      %514 = vmatpush1.msra.mxu0 0.0
      %515 = vmatprep.subr.mxu0 0.0
      %516 = vmatpush1.msra.mxu0 0.0
      %517 = vmatprep.subr.mxu0 0.0
      %518 = vmatpush1.msra.mxu0 0.0
      %519 = vmatprep.subr.mxu0 0.0
      %520 = vmatpush1.msra.mxu0 0.0
      %521 = vmatprep.subr.mxu0 0.0
      %522 = vmatpush1.msra.mxu0 0.0
      %523 = vmatprep.subr.mxu0 0.0
      %524 = vmatpush1.msra.mxu0 0.0
      %525 = vmatprep.subr.mxu0 0.0
      %526 = vmatpush1.msra.mxu0 0.0
      %527 = vmatprep.subr.mxu0 0.0
      %528 = vmatpush1.msra.mxu0 0.0
      %529 = vmatprep.subr.mxu0 0.0
      %530 = vmatpush1.msra.mxu0 0.0
      %531 = vmatprep.subr.mxu0 0.0
      %532 = vmatpush1.msra.mxu0 0.0
      %533 = vmatprep.mubr.f32.mxu0 0.0
      %534 = vmatmul.mubr.f32.gmra.mrb[0].mxu0 %v465
      %v535 = vpop.f32.mrb[0].mxu0
      %v536 = vadd.f32 0.0, %v535
      %v537 = vpop.f32.mrb[0].mxu0
      %538 = vmatprep.mubr.f32.mxu0 0.0
      %539 = vmatmul.mubr.f32.gmra.mrb[0].mxu0 %v467
      %v540 = vpop.f32.mrb[0].mxu0
      %v541 = vadd.f32 0.0, %v540
      %v542 = vpop.f32.mrb[0].mxu0
      %543 = vdwg.mxu0
      %v544 = vadd.f32 %v442, %v536
      %v545 = vadd.f32 %v447, %v541
      %s546 = scalar_lea.vmem %s3, 192
      %v547 = vld [vmem:[%s546] sm:$0xff]
      %v548 = vld [vmem:[%s546 + $0x8] sm:$0xff]
      %v549 = vld [vmem:[%s546 + $0x10] sm:$0xff]
      %v550 = vld [vmem:[%s546 + $0x18] sm:$0xff]
      %v551 = vld [vmem:[%s546 + $0x20] sm:$0xff]
      %v552 = vld [vmem:[%s546 + $0x28] sm:$0xff]
      %v553 = vld [vmem:[%s546 + $0x30] sm:$0xff]
      %v554 = vld [vmem:[%s546 + $0x38] sm:$0xff]
      %vm555 = vcmask 1044480
      %v556 = vrot.slane %v264, 3
      %v557 = vrot.slane %v261, 3
      %v558 = vsel %vm555, %v556, %v557
      %v559 = vrot.slane %v265, 3
      %v560 = vsel %vm555, %v557, %v559
      %v561 = vsel %vm291, %v558, 0
      %v563 = vsel %vm291, %v560, 0
      %565 = vmatprep.subr.mxu0 0.0
      %566 = vmatpush1.msra.mxu0 %v547
      %567 = vmatprep.subr.mxu0 0.0
      %568 = vmatpush1.msra.mxu0 %v548
      %569 = vmatprep.subr.mxu0 0.0
      %570 = vmatpush1.msra.mxu0 %v549
      %571 = vmatprep.subr.mxu0 0.0
      %572 = vmatpush1.msra.mxu0 %v550
      %573 = vmatprep.subr.mxu0 0.0
      %574 = vmatpush1.msra.mxu0 %v551
      %575 = vmatprep.subr.mxu0 0.0
      %576 = vmatpush1.msra.mxu0 %v552
      %577 = vmatprep.subr.mxu0 0.0
      %578 = vmatpush1.msra.mxu0 %v553
      %579 = vmatprep.subr.mxu0 0.0
      %580 = vmatpush1.msra.mxu0 %v554
      %581 = vmatprep.subr.mxu0 0.0
      %582 = vmatpush1.msra.mxu0 0.0
      %583 = vmatprep.subr.mxu0 0.0
      %584 = vmatpush1.msra.mxu0 0.0
      %585 = vmatprep.subr.mxu0 0.0
      %586 = vmatpush1.msra.mxu0 0.0
      %587 = vmatprep.subr.mxu0 0.0
      %588 = vmatpush1.msra.mxu0 0.0
      %589 = vmatprep.subr.mxu0 0.0
      %590 = vmatpush1.msra.mxu0 0.0
      %591 = vmatprep.subr.mxu0 0.0
      %592 = vmatpush1.msra.mxu0 0.0
      %593 = vmatprep.subr.mxu0 0.0
      %594 = vmatpush1.msra.mxu0 0.0
      %595 = vmatprep.subr.mxu0 0.0
      %596 = vmatpush1.msra.mxu0 0.0
      %597 = vmatprep.subr.mxu0 0.0
      %598 = vmatpush1.msra.mxu0 0.0
      %599 = vmatprep.subr.mxu0 0.0
      %600 = vmatpush1.msra.mxu0 0.0
      %601 = vmatprep.subr.mxu0 0.0
      %602 = vmatpush1.msra.mxu0 0.0
      %603 = vmatprep.subr.mxu0 0.0
      %604 = vmatpush1.msra.mxu0 0.0
      %605 = vmatprep.subr.mxu0 0.0
      %606 = vmatpush1.msra.mxu0 0.0
      %607 = vmatprep.subr.mxu0 0.0
      %608 = vmatpush1.msra.mxu0 0.0
      %609 = vmatprep.subr.mxu0 0.0
      %610 = vmatpush1.msra.mxu0 0.0
      %611 = vmatprep.subr.mxu0 0.0
      %612 = vmatpush1.msra.mxu0 0.0
      %613 = vmatprep.subr.mxu0 0.0
      %614 = vmatpush1.msra.mxu0 0.0
      %615 = vmatprep.subr.mxu0 0.0
      %616 = vmatpush1.msra.mxu0 0.0
      %617 = vmatprep.subr.mxu0 0.0
      %618 = vmatpush1.msra.mxu0 0.0
      %619 = vmatprep.subr.mxu0 0.0
      %620 = vmatpush1.msra.mxu0 0.0
      %621 = vmatprep.subr.mxu0 0.0
      %622 = vmatpush1.msra.mxu0 0.0
      %623 = vmatprep.subr.mxu0 0.0
      %624 = vmatpush1.msra.mxu0 0.0
      %625 = vmatprep.subr.mxu0 0.0
      %626 = vmatpush1.msra.mxu0 0.0
      %627 = vmatprep.subr.mxu0 0.0
      %628 = vmatpush1.msra.mxu0 0.0
      %629 = vmatprep.mubr.f32.mxu0 0.0
      %630 = vmatmul.mubr.f32.gmra.mrb[0].mxu0 %v561
      %v631 = vpop.f32.mrb[0].mxu0
      %v632 = vadd.f32 0.0, %v631
      %v633 = vpop.f32.mrb[0].mxu0
      %634 = vmatprep.mubr.f32.mxu0 0.0
      %635 = vmatmul.mubr.f32.gmra.mrb[0].mxu0 %v563
      %v636 = vpop.f32.mrb[0].mxu0
      %v637 = vadd.f32 0.0, %v636
      %v638 = vpop.f32.mrb[0].mxu0
      %639 = vdwg.mxu0
      %v640 = vadd.f32 %v544, %v632
      %v641 = vadd.f32 %v545, %v637
      %s642 = scalar_lea.vmem %s3, 256
      %v643 = vld [vmem:[%s642] sm:$0xff]
      %v644 = vld [vmem:[%s642 + $0x8] sm:$0xff]
      %v645 = vld [vmem:[%s642 + $0x10] sm:$0xff]
      %v646 = vld [vmem:[%s642 + $0x18] sm:$0xff]
      %v647 = vld [vmem:[%s642 + $0x20] sm:$0xff]
      %v648 = vld [vmem:[%s642 + $0x28] sm:$0xff]
      %v649 = vld [vmem:[%s642 + $0x30] sm:$0xff]
      %v650 = vld [vmem:[%s642 + $0x38] sm:$0xff]
      %vm651 = vcmask 1043456
      %v652 = vrot.slane %v264, 4
      %v653 = vrot.slane %v261, 4
      %v654 = vsel %vm651, %v652, %v653
      %v655 = vrot.slane %v265, 4
      %v656 = vsel %vm651, %v653, %v655
      %v657 = vsel %vm291, %v654, 0
      %v659 = vsel %vm291, %v656, 0
      %661 = vmatprep.subr.mxu0 0.0
      %662 = vmatpush1.msra.mxu0 %v643
      %663 = vmatprep.subr.mxu0 0.0
      %664 = vmatpush1.msra.mxu0 %v644
      %665 = vmatprep.subr.mxu0 0.0
      %666 = vmatpush1.msra.mxu0 %v645
      %667 = vmatprep.subr.mxu0 0.0
      %668 = vmatpush1.msra.mxu0 %v646
      %669 = vmatprep.subr.mxu0 0.0
      %670 = vmatpush1.msra.mxu0 %v647
      %671 = vmatprep.subr.mxu0 0.0
      %672 = vmatpush1.msra.mxu0 %v648
      %673 = vmatprep.subr.mxu0 0.0
      %674 = vmatpush1.msra.mxu0 %v649
      %675 = vmatprep.subr.mxu0 0.0
      %676 = vmatpush1.msra.mxu0 %v650
      %677 = vmatprep.subr.mxu0 0.0
      %678 = vmatpush1.msra.mxu0 0.0
      %679 = vmatprep.subr.mxu0 0.0
      %680 = vmatpush1.msra.mxu0 0.0
      %681 = vmatprep.subr.mxu0 0.0
      %682 = vmatpush1.msra.mxu0 0.0
      %683 = vmatprep.subr.mxu0 0.0
      %684 = vmatpush1.msra.mxu0 0.0
      %685 = vmatprep.subr.mxu0 0.0
      %686 = vmatpush1.msra.mxu0 0.0
      %687 = vmatprep.subr.mxu0 0.0
      %688 = vmatpush1.msra.mxu0 0.0
      %689 = vmatprep.subr.mxu0 0.0
      %690 = vmatpush1.msra.mxu0 0.0
      %691 = vmatprep.subr.mxu0 0.0
      %692 = vmatpush1.msra.mxu0 0.0
      %693 = vmatprep.subr.mxu0 0.0
      %694 = vmatpush1.msra.mxu0 0.0
      %695 = vmatprep.subr.mxu0 0.0
      %696 = vmatpush1.msra.mxu0 0.0
      %697 = vmatprep.subr.mxu0 0.0
      %698 = vmatpush1.msra.mxu0 0.0
      %699 = vmatprep.subr.mxu0 0.0
      %700 = vmatpush1.msra.mxu0 0.0
      %701 = vmatprep.subr.mxu0 0.0
      %702 = vmatpush1.msra.mxu0 0.0
      %703 = vmatprep.subr.mxu0 0.0
      %704 = vmatpush1.msra.mxu0 0.0
      %705 = vmatprep.subr.mxu0 0.0
      %706 = vmatpush1.msra.mxu0 0.0
      %707 = vmatprep.subr.mxu0 0.0
      %708 = vmatpush1.msra.mxu0 0.0
      %709 = vmatprep.subr.mxu0 0.0
      %710 = vmatpush1.msra.mxu0 0.0
      %711 = vmatprep.subr.mxu0 0.0
      %712 = vmatpush1.msra.mxu0 0.0
      %713 = vmatprep.subr.mxu0 0.0
      %714 = vmatpush1.msra.mxu0 0.0
      %715 = vmatprep.subr.mxu0 0.0
      %716 = vmatpush1.msra.mxu0 0.0
      %717 = vmatprep.subr.mxu0 0.0
      %718 = vmatpush1.msra.mxu0 0.0
      %719 = vmatprep.subr.mxu0 0.0
      %720 = vmatpush1.msra.mxu0 0.0
      %721 = vmatprep.subr.mxu0 0.0
      %722 = vmatpush1.msra.mxu0 0.0
      %723 = vmatprep.subr.mxu0 0.0
      %724 = vmatpush1.msra.mxu0 0.0
      %725 = vmatprep.mubr.f32.mxu0 0.0
      %726 = vmatmul.mubr.f32.gmra.mrb[0].mxu0 %v657
      %v727 = vpop.f32.mrb[0].mxu0
      %v728 = vadd.f32 0.0, %v727
      %v729 = vpop.f32.mrb[0].mxu0
      %730 = vmatprep.mubr.f32.mxu0 0.0
      %731 = vmatmul.mubr.f32.gmra.mrb[0].mxu0 %v659
      %v732 = vpop.f32.mrb[0].mxu0
      %v733 = vadd.f32 0.0, %v732
      %v734 = vpop.f32.mrb[0].mxu0
      %735 = vdwg.mxu0
      %v736 = vadd.f32 %v640, %v728
      %v737 = vadd.f32 %v641, %v733
      %738 = vst [vmem:[%s231] sm:$0xff] %v736
      %739 = vst [vmem:[%s231 + $0x8] sm:$0xff] %v737
      %v740 = vadd.f32 %v736, %v737
      %v741 = vrot.slane %v740, 4
      %v742 = vadd.f32 %v740, %v741
      %v743 = vrot.slane %v742, 2
      %v744 = vadd.f32 %v742, %v743
      %v745 = vrot.slane %v744, 1
      %v746 = vadd.f32 %v744, %v745
      %v747 = vmul.f32 %v736, %v736
      %v748 = vmul.f32 %v737, %v737
      %v749 = vadd.f32 %v747, %v748
      %v750 = vrot.slane %v749, 4
      %v751 = vadd.f32 %v749, %v750
      %v752 = vrot.slane %v751, 2
      %v753 = vadd.f32 %v751, %v752
      %v754 = vrot.slane %v753, 1
      %v755 = vadd.f32 %v753, %v754
      %vm756 = vcmask 1040384
      %v757 = vsel %vm756, %v746, %v755
      %758 = vst [vmem:[%s235] sm:$0x3] %v757
      %p759 = scmp.lt.s32.totalorder %s17, 1
      %s760 = scalar_select %p759, %s17, 1
      %s761 = smul.addr %s760, 2
      %s762 = smul.addr %s761, 8
      %s763 = scalar_lea.vmem %s4, %s762
      %p764 = scmp.lt.s32.totalorder %s17, 1
      %s765 = scalar_select %p764, %s17, 1
      %s766 = smul.addr %s765, 2
      %s767 = scalar_lea.vmem %s5, %s766
      // Predicated region
      $region37: #{conv_block_forward.4} parent=35 // pred_check
        %p768 = pneg %p124
      $region38: #{conv_block_forward.4} parent=35 // pred_check_branch
        %770 = sbr.rel (%p768) target = $region40
      $region39: #{conv_block_forward.4} parent=35 // pred_region
        _
      $region40: #{conv_block_forward.4} parent=35 // pred_fallthru
        _
      // Predicated region
      $region41: #{conv_block_forward.4} parent=35 // pred_check
        %p771 = pneg %p150
      $region42: #{conv_block_forward.4} parent=35 // pred_check_branch
        %773 = sbr.rel (%p771) target = $region44
      $region43: #{conv_block_forward.4} parent=35 // pred_region
        _
      $region44: #{conv_block_forward.4} parent=35 // pred_fallthru
        _
    $region36: #{conv_block_forward.4} parent=5 // pred_fallthru
      _
    %p774 = scmp.le.s32.totalorder 2, %s12
    // Predicated region
    $region45: #{conv_block_forward.4} parent=5 // pred_check
      %p775 = pneg %p774
    $region46: #{conv_block_forward.4} parent=5 // pred_check_branch
      %777 = sbr.rel (%p775) target = $region48
    $region47: #{conv_block_forward.4} parent=5 // pred_region
      %s778 = ssub.s32 %s12, 2
      // Predicated region
      $region49: #{conv_block_forward.4} parent=47 // pred_check
        %p779 = pneg %p130
      $region50: #{conv_block_forward.4} parent=47 // pred_check_branch
        %781 = sbr.rel (%p779) target = $region52
      $region51: #{conv_block_forward.4} parent=47 // pred_region
        %p782 = scmp.lt.s32.totalorder %s18, 1
        %s783 = scalar_select %p782, %s18, 1
        %s784 = smul.addr %s783, 2
        %s785 = smul.addr %s784, 8
        %s786 = scalar_lea.vmem %s4, %s785
      $region52: #{conv_block_forward.4} parent=47 // pred_fallthru
        _
      // Predicated region
      $region53: #{conv_block_forward.4} parent=47 // pred_check
        %p787 = pneg %p156
      $region54: #{conv_block_forward.4} parent=47 // pred_check_branch
        %789 = sbr.rel (%p787) target = $region56
      $region55: #{conv_block_forward.4} parent=47 // pred_region
        %p790 = scmp.lt.s32.totalorder %s18, 1
        %s791 = scalar_select %p790, %s18, 1
        %s792 = smul.addr %s791, 2
        %s793 = scalar_lea.vmem %s5, %s792
      $region56: #{conv_block_forward.4} parent=47 // pred_fallthru
        _
    $region48: #{conv_block_forward.4} parent=5 // pred_fallthru
      _
  $region6: #{conv_block_forward.4} parent=0 // loop_footer
    %s16 = sadd.s32 1, %s12
  $region7: #{conv_block_forward.4} parent=0 // loop_footer_branch
    %11 = sbr.rel target = $region3
  $region8: #{conv_block_forward.4} parent=0 // loop_exit
    _

// kernel: tile.47
$region0: #{tile.47}
  #allocation0 [shape = 's32[1]{0}', space=sflag, size = 0x4, scoped, tag = 'scoped memory for tile.47']
  %s0 = inlined_call_operand.vmem [shape: f32[8], index: 0, kind: input, shape index: {}]
  %s1 = inlined_call_operand.vmem [shape: f32[16,8], index: 1, kind: output, shape index: {}]
  // Predicated region
  $region2: #{tile.47} parent=0 // pred_check
    _
  $region3: #{tile.47} parent=0 // pred_check_branch
    %3 = sbr.rel (0) target = $region5
  $region4: #{tile.47} parent=0 // pred_region
    _
  $region5: #{tile.47} parent=0 // pred_fallthru
    _
  %v4 = vld [vmem:[%s0] ss:$0 sm:$0xff]
  %5 = vst [vmem:[%s1] sm:$0xff] %v4
  %s6 = scalar_lea.vmem %s1, 8
  %7 = vst [vmem:[%s6] sm:$0xff] %v4

// kernel: tile.48
$region0: #{tile.48}
  %s0 = inlined_call_operand.vmem [shape: f32[16,8], index: 0, kind: input, shape index: {}]
  %s1 = inlined_call_operand.vmem [shape: f32[1,128], index: 1, kind: output, shape index: {}]
  $region1: #{tile.48} parent=0
    #allocation0 [shape = 'u8[4096]{0}', space=vmem, size = 0x1000, scoped, tag = 'scoped mem for output reshape']
    %v2 = vld [vmem:[%s0] sm:$0x1]
    %vm3 = vcmask 64512
    %4 = vst.msk [vmem:[#allocation0] sm:$0x1] %vm3, %v2
    %s5 = scalar_lea.vmem %s0, 15
    %v6 = vld [vmem:[%s5] sm:$0x1]
    %7 = vrot.lane.b32.xlu0 %v6, 120
    %v8 = vpop.permute.xlu0 %7
    %vm9 = vcmask 1048512
    %10 = vst.msk [vmem:[#allocation0] sm:$0x1] %vm9, %v8
    %s11 = scalar_lea.vmem %s0, 14
    %v12 = vld [vmem:[%s11] sm:$0x1]
    %13 = vrot.lane.b32.xlu0 %v12, 112
    %v14 = vpop.permute.xlu0 %13
    %vm15 = vcmask 982912
    %16 = vst.msk [vmem:[#allocation0] sm:$0x1] %vm15, %v14
    %s17 = scalar_lea.vmem %s0, 13
    %v18 = vld [vmem:[%s17] sm:$0x1]
    %19 = vrot.lane.b32.xlu0 %v18, 104
    %v20 = vpop.permute.xlu0 %19
    %vm21 = vcmask 917312
    %22 = vst.msk [vmem:[#allocation0] sm:$0x1] %vm21, %v20
    %s23 = scalar_lea.vmem %s0, 12
    %v24 = vld [vmem:[%s23] sm:$0x1]
    %25 = vrot.lane.b32.xlu0 %v24, 96
    %v26 = vpop.permute.xlu0 %25
    %vm27 = vcmask 851712
    %28 = vst.msk [vmem:[#allocation0] sm:$0x1] %vm27, %v26
    %s29 = scalar_lea.vmem %s0, 11
    %v30 = vld [vmem:[%s29] sm:$0x1]
    %31 = vrot.lane.b32.xlu0 %v30, 88
    %v32 = vpop.permute.xlu0 %31
    %vm33 = vcmask 786112
    %34 = vst.msk [vmem:[#allocation0] sm:$0x1] %vm33, %v32
    %s35 = scalar_lea.vmem %s0, 10
    %v36 = vld [vmem:[%s35] sm:$0x1]
    %37 = vrot.lane.b32.xlu0 %v36, 80
    %v38 = vpop.permute.xlu0 %37
    %vm39 = vcmask 720512
    %40 = vst.msk [vmem:[#allocation0] sm:$0x1] %vm39, %v38
    %s41 = scalar_lea.vmem %s0, 9
    %v42 = vld [vmem:[%s41] sm:$0x1]
    %43 = vrot.lane.b32.xlu0 %v42, 72
    %v44 = vpop.permute.xlu0 %43
    %vm45 = vcmask 654912
    %46 = vst.msk [vmem:[#allocation0] sm:$0x1] %vm45, %v44
    %s47 = scalar_lea.vmem %s0, 8
    %v48 = vld [vmem:[%s47] sm:$0x1]
    %49 = vrot.lane.b32.xlu0 %v48, 64
    %v50 = vpop.permute.xlu0 %49
    %vm51 = vcmask 589312
    %52 = vst.msk [vmem:[#allocation0] sm:$0x1] %vm51, %v50
    %s53 = scalar_lea.vmem %s0, 7
    %v54 = vld [vmem:[%s53] sm:$0x1]
    %55 = vrot.lane.b32.xlu0 %v54, 56
    %v56 = vpop.permute.xlu0 %55
    %vm57 = vcmask 523712
    %58 = vst.msk [vmem:[#allocation0] sm:$0x1] %vm57, %v56
    %s59 = scalar_lea.vmem %s0, 6
    %v60 = vld [vmem:[%s59] sm:$0x1]
    %61 = vrot.lane.b32.xlu0 %v60, 48
    %v62 = vpop.permute.xlu0 %61
    %vm63 = vcmask 458112
    %64 = vst.msk [vmem:[#allocation0] sm:$0x1] %vm63, %v62
    %s65 = scalar_lea.vmem %s0, 5
    %v66 = vld [vmem:[%s65] sm:$0x1]
    %67 = vrot.lane.b32.xlu0 %v66, 40
    %v68 = vpop.permute.xlu0 %67
    %vm69 = vcmask 392512
    %70 = vst.msk [vmem:[#allocation0] sm:$0x1] %vm69, %v68
    %s71 = scalar_lea.vmem %s0, 4
    %v72 = vld [vmem:[%s71] sm:$0x1]
    %73 = vrot.lane.b32.xlu0 %v72, 32
    %v74 = vpop.permute.xlu0 %73
    %vm75 = vcmask 326912
    %76 = vst.msk [vmem:[#allocation0] sm:$0x1] %vm75, %v74
    %s77 = scalar_lea.vmem %s0, 3
    %v78 = vld [vmem:[%s77] sm:$0x1]
    %79 = vrot.lane.b32.xlu0 %v78, 24
    %v80 = vpop.permute.xlu0 %79
    %vm81 = vcmask 261312
    %82 = vst.msk [vmem:[#allocation0] sm:$0x1] %vm81, %v80
    %s83 = scalar_lea.vmem %s0, 2
    %v84 = vld [vmem:[%s83] sm:$0x1]
    %85 = vrot.lane.b32.xlu0 %v84, 16
    %v86 = vpop.permute.xlu0 %85
    %vm87 = vcmask 195712
    %88 = vst.msk [vmem:[#allocation0] sm:$0x1] %vm87, %v86
    %s89 = scalar_lea.vmem %s0, 1
    %v90 = vld [vmem:[%s89] sm:$0x1]
    %91 = vrot.lane.b32.xlu0 %v90, 8
    %v92 = vpop.permute.xlu0 %91
    %vm93 = vcmask 130112
    %94 = vst.msk [vmem:[#allocation0] sm:$0x1] %vm93, %v92
    %s96 = sshllo.u32 0, 1
    %v98 = vld [vmem:[#allocation0] sm:%s96]
    %s99 = sshllo.u32 0, 1
    %100 = vst [vmem:[%s1] sm:%s99] %v98

// kernel: conv_block_forward.5
$region0: #{conv_block_forward.5}
  #allocation0 [shape = 'u32[]', space=smem, size = 0x4, offset = 0x4, fixed_abs, tag = 'smem constant byte address 0x4 - core index']
  #allocation1 [shape = 'u32[144,128]{1,0:T(1,128)}', space=vmem, size = 0x12000, scoped, tag = 'internal scratch']
  %s0 = inlined_call_operand.vmem [shape: f32[2,16,128], index: 0, kind: input, shape index: {}]
  %s1 = inlined_call_operand.vmem [shape: f32[1,128], index: 1, kind: input, shape index: {}]
  %s2 = inlined_call_operand.vmem [shape: f32[1,128], index: 2, kind: input, shape index: {}]
  %s3 = inlined_call_operand.vmem [shape: f32[3,128,64], index: 3, kind: input, shape index: {}]
  %s4 = inlined_call_operand.vmem [shape: f32[2,16,64], index: 4, kind: output, shape index: {0}]
  %s5 = inlined_call_operand.vmem [shape: f32[2,2,64], index: 5, kind: output, shape index: {1}]
  %6 = xla_tuple %s4, %s5
  %s7 = sld [smem:[#allocation0]]
  $region57: #{conv_block_forward.5} parent=0
    _
  %s9 = ssub.s32 1, %s7
  %s10 = scalar_select 0, %s9, %s7
  loop: start=0, step=1, limit=4
  $region2: #{conv_block_forward.5} parent=0 // loop_pre_header
    _
  $region3: #{conv_block_forward.5} parent=0 // loop_header
    %s12 = sphi 0, %s16
    %p13 = scmp.ge.s32.totalorder %s12, 4
    %s22 = sphi 0, %s24
    %s25 = sphi 0, %s22
    %s26 = sphi 0, %s25
    %s42 = sphi 0, %s26
    %s46 = sphi 0, %s46
    %s48 = sphi 0, %s46
    %s49 = sphi 0, %s48
    %s63 = sphi 0, %s49
    %s67 = sphi 0, %s67
    %s69 = sphi 0, %s67
    %s70 = sphi 0, %s69
    %s84 = sphi 0, %s70
    %s88 = sphi 0, %s88
    %s90 = sphi 0, %s88
    %s91 = sphi 0, %s90
    %s105 = sphi 0, %s91
    %s111 = sphi 0, %s113
    %s114 = sphi 0, %s111
    %s115 = sphi 0, %s114
    %s131 = sphi 0, %s115
    %s137 = sphi 0, %s139
    %s140 = sphi 0, %s137
    %s141 = sphi 0, %s140
    %s157 = sphi 0, %s141
  $region4: #{conv_block_forward.5} parent=0 // loop_header_branch
    %15 = sbr.rel (%p13) target = $region8
  $region5: #{conv_block_forward.5} parent=0 // loop_body
    %s17 = ssub.s32 %s12, 1
    %s18 = ssub.s32 %s12, 2
    %s19 = sadd.s32 %s12, 1
    %s20 = ssub.s32 %s12, %s19
    %p21 = scmp.eq.s32.totalorder %s20, 0
    %s23 = sadd.s32 %s22, 1
    %s24 = scalar_select %p21, %s22, %s23
    %p27 = pneg %p21
    %p28 = scmp.eq.s32.totalorder %s12, 1
    %p29 = por %p27, %p28
    %p30 = scmp.ne.s32.totalorder %s22, %s25
    %p31 = scmp.eq.s32.totalorder %s12, 0
    %p32 = por %p30, %p31
    %p33 = scmp.ne.s32.totalorder %s22, %s25
    %p34 = scmp.eq.s32.totalorder %s17, 1
    %p35 = por %p33, %p34
    %p36 = scmp.ne.s32.totalorder %s25, %s26
    %p37 = scmp.eq.s32.totalorder %s17, 0
    %p38 = por %p36, %p37
    %p39 = scmp.ne.s32.totalorder %s25, %s26
    %p40 = scmp.eq.s32.totalorder %s18, 1
    %p41 = por %p39, %p40
    %p43 = scmp.ne.s32.totalorder %s26, %s42
    %p44 = scmp.eq.s32.totalorder %s18, 0
    %p45 = por %p43, %p44
    %s47 = sadd.s32 %s46, 1
    %p50 = scmp.eq.s32.totalorder %s12, 1
    %p51 = scmp.ne.s32.totalorder %s46, %s48
    %p52 = scmp.eq.s32.totalorder %s12, 0
    %p53 = por %p51, %p52
    %p54 = scmp.ne.s32.totalorder %s46, %s48
    %p55 = scmp.eq.s32.totalorder %s17, 1
    %p56 = por %p54, %p55
    %p57 = scmp.ne.s32.totalorder %s48, %s49
    %p58 = scmp.eq.s32.totalorder %s17, 0
    %p59 = por %p57, %p58
    %p60 = scmp.ne.s32.totalorder %s48, %s49
    %p61 = scmp.eq.s32.totalorder %s18, 1
    %p62 = por %p60, %p61
    %p64 = scmp.ne.s32.totalorder %s49, %s63
    %p65 = scmp.eq.s32.totalorder %s18, 0
    %p66 = por %p64, %p65
    %s68 = sadd.s32 %s67, 1
    %p71 = scmp.eq.s32.totalorder %s12, 1
    %p72 = scmp.ne.s32.totalorder %s67, %s69
    %p73 = scmp.eq.s32.totalorder %s12, 0
    %p74 = por %p72, %p73
    %p75 = scmp.ne.s32.totalorder %s67, %s69
    %p76 = scmp.eq.s32.totalorder %s17, 1
    %p77 = por %p75, %p76
    %p78 = scmp.ne.s32.totalorder %s69, %s70
    %p79 = scmp.eq.s32.totalorder %s17, 0
    %p80 = por %p78, %p79
    %p81 = scmp.ne.s32.totalorder %s69, %s70
    %p82 = scmp.eq.s32.totalorder %s18, 1
    %p83 = por %p81, %p82
    %p85 = scmp.ne.s32.totalorder %s70, %s84
    %p86 = scmp.eq.s32.totalorder %s18, 0
    %p87 = por %p85, %p86
    %s89 = sadd.s32 %s88, 1
    %p92 = scmp.eq.s32.totalorder %s12, 1
    %p93 = scmp.ne.s32.totalorder %s88, %s90
    %p94 = scmp.eq.s32.totalorder %s12, 0
    %p95 = por %p93, %p94
    %p96 = scmp.ne.s32.totalorder %s88, %s90
    %p97 = scmp.eq.s32.totalorder %s17, 1
    %p98 = por %p96, %p97
    %p99 = scmp.ne.s32.totalorder %s90, %s91
    %p100 = scmp.eq.s32.totalorder %s17, 0
    %p101 = por %p99, %p100
    %p102 = scmp.ne.s32.totalorder %s90, %s91
    %p103 = scmp.eq.s32.totalorder %s18, 1
    %p104 = por %p102, %p103
    %p106 = scmp.ne.s32.totalorder %s91, %s105
    %p107 = scmp.eq.s32.totalorder %s18, 0
    %p108 = por %p106, %p107
    %s109 = ssub.s32 %s12, %s19
    %p110 = scmp.eq.s32.totalorder %s109, 0
    %s112 = sadd.s32 %s111, 1
    %s113 = scalar_select %p110, %s111, %s112
    %p116 = pneg %p110
    %p117 = scmp.eq.s32.totalorder %s12, 1
    %p118 = por %p116, %p117
    %p119 = scmp.ne.s32.totalorder %s111, %s114
    %p120 = scmp.eq.s32.totalorder %s12, 0
    %p121 = por %p119, %p120
    %p122 = scmp.ne.s32.totalorder %s111, %s114
    %p123 = scmp.eq.s32.totalorder %s17, 1
    %p124 = por %p122, %p123
    %p125 = scmp.ne.s32.totalorder %s114, %s115
    %p126 = scmp.eq.s32.totalorder %s17, 0
    %p127 = por %p125, %p126
    %p128 = scmp.ne.s32.totalorder %s114, %s115
    %p129 = scmp.eq.s32.totalorder %s18, 1
    %p130 = por %p128, %p129
    %p132 = scmp.ne.s32.totalorder %s115, %s131
    %p133 = scmp.eq.s32.totalorder %s18, 0
    %p134 = por %p132, %p133
    %s135 = ssub.s32 %s12, %s19
    %p136 = scmp.eq.s32.totalorder %s135, 0
    %s138 = sadd.s32 %s137, 1
    %s139 = scalar_select %p136, %s137, %s138
    %p142 = pneg %p136
    %p143 = scmp.eq.s32.totalorder %s12, 1
    %p144 = por %p142, %p143
    %p145 = scmp.ne.s32.totalorder %s137, %s140
    %p146 = scmp.eq.s32.totalorder %s12, 0
    %p147 = por %p145, %p146
    %p148 = scmp.ne.s32.totalorder %s137, %s140
    %p149 = scmp.eq.s32.totalorder %s17, 1
    %p150 = por %p148, %p149
    %p151 = scmp.ne.s32.totalorder %s140, %s141
    %p152 = scmp.eq.s32.totalorder %s17, 0
    %p153 = por %p151, %p152
    %p154 = scmp.ne.s32.totalorder %s140, %s141
    %p155 = scmp.eq.s32.totalorder %s18, 1
    %p156 = por %p154, %p155
    %p158 = scmp.ne.s32.totalorder %s141, %s157
    %p159 = scmp.eq.s32.totalorder %s18, 0
    %p160 = por %p158, %p159
    %p161 = scmp.le.s32.totalorder 1, %s12
    %p162 = scmp.lt.s32.totalorder %s12, 3
    %p163 = pnand %p161, %p162
    %p164 = pneg %p163
    // Predicated region
    $region9: #{conv_block_forward.5} parent=5 // pred_check
      _
    $region10: #{conv_block_forward.5} parent=5 // pred_check_branch
      %166 = sbr.rel (%p163) target = $region12
    $region11: #{conv_block_forward.5} parent=5 // pred_region
      %s167 = ssub.s32 %s12, 1
      // Predicated region
      $region13: #{conv_block_forward.5} parent=11 // pred_check
        %p168 = pneg %p59
      $region14: #{conv_block_forward.5} parent=11 // pred_check_branch
        %170 = sbr.rel (%p168) target = $region16
      $region15: #{conv_block_forward.5} parent=11 // pred_region
        _
      $region16: #{conv_block_forward.5} parent=11 // pred_fallthru
        _
      // Predicated region
      $region17: #{conv_block_forward.5} parent=11 // pred_check
        %p171 = pneg %p80
      $region18: #{conv_block_forward.5} parent=11 // pred_check_branch
        %173 = sbr.rel (%p171) target = $region20
      $region19: #{conv_block_forward.5} parent=11 // pred_region
        _
      $region20: #{conv_block_forward.5} parent=11 // pred_fallthru
        _
      // Predicated region
      $region21: #{conv_block_forward.5} parent=11 // pred_check
        %p174 = pneg %p101
      $region22: #{conv_block_forward.5} parent=11 // pred_check_branch
        %176 = sbr.rel (%p174) target = $region24
      $region23: #{conv_block_forward.5} parent=11 // pred_region
        _
      $region24: #{conv_block_forward.5} parent=11 // pred_fallthru
        _
    $region12: #{conv_block_forward.5} parent=5 // pred_fallthru
      _
    %p177 = scmp.lt.s32.totalorder %s12, 2
    // Predicated region
    $region25: #{conv_block_forward.5} parent=5 // pred_check
      %p178 = pneg %p177
    $region26: #{conv_block_forward.5} parent=5 // pred_check_branch
      %180 = sbr.rel (%p178) target = $region28
    $region27: #{conv_block_forward.5} parent=5 // pred_region
      // Predicated region
      $region29: #{conv_block_forward.5} parent=27 // pred_check
        %p181 = pneg %p32
      $region30: #{conv_block_forward.5} parent=27 // pred_check_branch
        %183 = sbr.rel (%p181) target = $region32
      $region31: #{conv_block_forward.5} parent=27 // pred_region
        %p184 = scmp.lt.s32.totalorder %s12, 1
        %s185 = scalar_select %p184, %s12, 1
        %s186 = smul.addr %s185, 2
        %s187 = smul.addr %s186, 8
        %s188 = scalar_lea.vmem %s0, %s187
      $region32: #{conv_block_forward.5} parent=27 // pred_fallthru
        _
    $region28: #{conv_block_forward.5} parent=5 // pred_fallthru
      _
    %p189 = scmp.le.s32.totalorder 1, %s12
    %p190 = scmp.lt.s32.totalorder %s12, 3
    %p191 = pnand %p189, %p190
    %p192 = pneg %p191
    // Predicated region
    $region33: #{conv_block_forward.5} parent=5 // pred_check
      _
    $region34: #{conv_block_forward.5} parent=5 // pred_check_branch
      %194 = sbr.rel (%p191) target = $region36
    $region35: #{conv_block_forward.5} parent=5 // pred_region
      %s195 = ssub.s32 %s12, 1
      %p196 = scmp.lt.s32.totalorder %s17, 1
      %s197 = scalar_select %p196, %s17, 1
      %s198 = smul.addr %s197, 2
      %s199 = smul.addr %s198, 8
      %s200 = scalar_lea.vmem %s0, %s199
      %p201 = pneg %p38
      %p202 = pneg %p35
      %p203 = pneg %p59
      %p204 = pneg %p56
      %p205 = pneg %p80
      %p206 = pneg %p77
      %p207 = pneg %p101
      %p208 = pneg %p98
      %p209 = pneg %p127
      %p210 = pneg %p124
      %p211 = scmp.lt.s32.totalorder %s17, 1
      %s212 = scalar_select %p211, %s17, 1
      %s213 = smul.addr %s212, 2
      %s214 = smul.addr %s213, 8
      %s215 = scalar_lea.vmem %s4, %s214
      %p216 = pneg %p153
      %p217 = pneg %p150
      %p218 = scmp.lt.s32.totalorder %s17, 1
      %s219 = scalar_select %p218, %s17, 1
      %s220 = smul.addr %s219, 2
      %s221 = scalar_lea.vmem %s5, %s220
      %p222 = scmp.lt.s32.totalorder %s17, 1
      %s223 = scalar_select %p222, %s17, 1
      %s224 = smul.addr %s223, 2
      %s225 = smul.addr %s224, 8
      %s226 = scalar_lea.vmem %s0, %s225
      %p227 = scmp.lt.s32.totalorder %s17, 1
      %s228 = scalar_select %p227, %s17, 1
      %s229 = smul.addr %s228, 2
      %s230 = smul.addr %s229, 8
      %s231 = scalar_lea.vmem %s4, %s230
      %p232 = scmp.lt.s32.totalorder %s17, 1
      %s233 = scalar_select %p232, %s17, 1
      %s234 = smul.addr %s233, 2
      %s235 = scalar_lea.vmem %s5, %s234
      %v236 = vld [vmem:[%s226] sm:$0xff]
      %v237 = vld [vmem:[%s226 + $0x8] sm:$0xff]
      %v238 = vld [vmem:[%s1] sm:$0x1]
      %v240 = vlaneseq
      %v241 = vshrl.u32 %v240, 7
      %v242 = vsub.s32 0, %v241
      %v243 = vrot.slane %v238, %v242
      %v245 = vmul.f32 %v236, %v243
      %v246 = vmul.f32 %v237, %v243
      %v247 = vld [vmem:[%s2] sm:$0x1]
      %v249 = vlaneseq
      %v250 = vshrl.u32 %v249, 7
      %v251 = vsub.s32 0, %v250
      %v252 = vrot.slane %v247, %v251
      %v254 = vadd.f32 %v245, %v252
      %v255 = vadd.f32 %v246, %v252
      %vm258 = vcmask 1040384
      %v259 = vrot.slane %v254, 7
      %v260 = vrot.slane %v255, 7
      %v261 = vsel %vm258, %v259, %v260
      %v265 = vsel %vm258, 0.0, %v259
      %v266 = vsel %vm258, %v260, 0.0
      %v267 = vld [vmem:[%s3] sm:$0xff]
      %v268 = vld [vmem:[%s3 + $0x8] sm:$0xff]
      %v269 = vld [vmem:[%s3 + $0x10] sm:$0xff]
      %v270 = vld [vmem:[%s3 + $0x18] sm:$0xff]
      %v271 = vld [vmem:[%s3 + $0x20] sm:$0xff]
      %v272 = vld [vmem:[%s3 + $0x28] sm:$0xff]
      %v273 = vld [vmem:[%s3 + $0x30] sm:$0xff]
      %v274 = vld [vmem:[%s3 + $0x38] sm:$0xff]
      %v275 = vld [vmem:[%s3 + $0x40] sm:$0xff]
      %v276 = vld [vmem:[%s3 + $0x48] sm:$0xff]
      %v277 = vld [vmem:[%s3 + $0x50] sm:$0xff]
      %v278 = vld [vmem:[%s3 + $0x58] sm:$0xff]
      %v279 = vld [vmem:[%s3 + $0x60] sm:$0xff]
      %v280 = vld [vmem:[%s3 + $0x68] sm:$0xff]
      %v281 = vld [vmem:[%s3 + $0x70] sm:$0xff]
      %v282 = vld [vmem:[%s3 + $0x78] sm:$0xff]
      %s283 = scalar_lea.vmem %s3, 128
      %v284 = vld [vmem:[%s283] sm:$0xff]
      %v285 = vld [vmem:[%s283 + $0x8] sm:$0xff]
      %v286 = vld [vmem:[%s283 + $0x10] sm:$0xff]
      %v287 = vld [vmem:[%s283 + $0x18] sm:$0xff]
      %v288 = vld [vmem:[%s283 + $0x20] sm:$0xff]
      %v289 = vld [vmem:[%s283 + $0x28] sm:$0xff]
      %v290 = vld [vmem:[%s283 + $0x30] sm:$0xff]
      %v291 = vld [vmem:[%s283 + $0x38] sm:$0xff]
      %v292 = vld [vmem:[%s283 + $0x40] sm:$0xff]
      %v293 = vld [vmem:[%s283 + $0x48] sm:$0xff]
      %v294 = vld [vmem:[%s283 + $0x50] sm:$0xff]
      %v295 = vld [vmem:[%s283 + $0x58] sm:$0xff]
      %v296 = vld [vmem:[%s283 + $0x60] sm:$0xff]
      %v297 = vld [vmem:[%s283 + $0x68] sm:$0xff]
      %v298 = vld [vmem:[%s283 + $0x70] sm:$0xff]
      %v299 = vld [vmem:[%s283 + $0x78] sm:$0xff]
      %vm302 = vcmask 1046528
      %v303 = vrot.slane %v265, 1
      %v304 = vrot.slane %v261, 1
      %v305 = vsel %vm302, %v303, %v304
      %v306 = vrot.slane %v266, 1
      %v307 = vsel %vm302, %v304, %v306
      %310 = vmatprep.subr.mxu0 0.0
      %311 = vmatpush1.msra.mxu0 %v284
      %312 = vmatprep.subr.mxu0 0.0
      %313 = vmatpush1.msra.mxu0 %v285
      %314 = vmatprep.subr.mxu0 0.0
      %315 = vmatpush1.msra.mxu0 %v286
      %316 = vmatprep.subr.mxu0 0.0
      %317 = vmatpush1.msra.mxu0 %v287
      %318 = vmatprep.subr.mxu0 0.0
      %319 = vmatpush1.msra.mxu0 %v288
      %320 = vmatprep.subr.mxu0 0.0
      %321 = vmatpush1.msra.mxu0 %v289
      %322 = vmatprep.subr.mxu0 0.0
      %323 = vmatpush1.msra.mxu0 %v290
      %324 = vmatprep.subr.mxu0 0.0
      %325 = vmatpush1.msra.mxu0 %v291
      %326 = vmatprep.subr.mxu0 0.0
      %327 = vmatpush1.msra.mxu0 %v292
      %328 = vmatprep.subr.mxu0 0.0
      %329 = vmatpush1.msra.mxu0 %v293
      %330 = vmatprep.subr.mxu0 0.0
      %331 = vmatpush1.msra.mxu0 %v294
      %332 = vmatprep.subr.mxu0 0.0
      %333 = vmatpush1.msra.mxu0 %v295
      %334 = vmatprep.subr.mxu0 0.0
      %335 = vmatpush1.msra.mxu0 %v296
      %336 = vmatprep.subr.mxu0 0.0
      %337 = vmatpush1.msra.mxu0 %v297
      %338 = vmatprep.subr.mxu0 0.0
      %339 = vmatpush1.msra.mxu0 %v298
      %340 = vmatprep.subr.mxu0 0.0
      %341 = vmatpush1.msra.mxu0 %v299
      %342 = vmatprep.subr.mxu0 0.0
      %343 = vmatpush1.msra.mxu0 0.0
      %344 = vmatprep.subr.mxu0 0.0
      %345 = vmatpush1.msra.mxu0 0.0
      %346 = vmatprep.subr.mxu0 0.0
      %347 = vmatpush1.msra.mxu0 0.0
      %348 = vmatprep.subr.mxu0 0.0
      %349 = vmatpush1.msra.mxu0 0.0
      %350 = vmatprep.subr.mxu0 0.0
      %351 = vmatpush1.msra.mxu0 0.0
      %352 = vmatprep.subr.mxu0 0.0
      %353 = vmatpush1.msra.mxu0 0.0
      %354 = vmatprep.subr.mxu0 0.0
      %355 = vmatpush1.msra.mxu0 0.0
      %356 = vmatprep.subr.mxu0 0.0
      %357 = vmatpush1.msra.mxu0 0.0
      %358 = vmatprep.subr.mxu0 0.0
      %359 = vmatpush1.msra.mxu0 0.0
      %360 = vmatprep.subr.mxu0 0.0
      %361 = vmatpush1.msra.mxu0 0.0
      %362 = vmatprep.subr.mxu0 0.0
      %363 = vmatpush1.msra.mxu0 0.0
      %364 = vmatprep.subr.mxu0 0.0
      %365 = vmatpush1.msra.mxu0 0.0
      %366 = vmatprep.subr.mxu0 0.0
      %367 = vmatpush1.msra.mxu0 0.0
      %368 = vmatprep.subr.mxu0 0.0
      %369 = vmatpush1.msra.mxu0 0.0
      %370 = vmatprep.subr.mxu0 0.0
      %371 = vmatpush1.msra.mxu0 0.0
      %372 = vmatprep.subr.mxu0 0.0
      %373 = vmatpush1.msra.mxu0 0.0
      %374 = vmatprep.mubr.f32.mxu0 0.0
      %375 = vmatmul.mubr.f32.gmra.mrb[0].mxu0 %v305
      %v376 = vpop.f32.mrb[0].mxu0
      %v377 = vadd.f32 0.0, %v376
      %v378 = vpop.f32.mrb[0].mxu0
      %379 = vmatprep.mubr.f32.mxu0 0.0
      %380 = vmatmul.mubr.f32.gmra.mrb[0].mxu0 %v307
      %v381 = vpop.f32.mrb[0].mxu0
      %v382 = vadd.f32 0.0, %v381
      %v383 = vpop.f32.mrb[0].mxu0
      %384 = vdwg.mxu0
      %385 = vmatprep.subr.mxu0 0.0
      %386 = vmatpush1.msra.mxu0 %v267
      %387 = vmatprep.subr.mxu0 0.0
      %388 = vmatpush1.msra.mxu0 %v268
      %389 = vmatprep.subr.mxu0 0.0
      %390 = vmatpush1.msra.mxu0 %v269
      %391 = vmatprep.subr.mxu0 0.0
      %392 = vmatpush1.msra.mxu0 %v270
      %393 = vmatprep.subr.mxu0 0.0
      %394 = vmatpush1.msra.mxu0 %v271
      %395 = vmatprep.subr.mxu0 0.0
      %396 = vmatpush1.msra.mxu0 %v272
      %397 = vmatprep.subr.mxu0 0.0
      %398 = vmatpush1.msra.mxu0 %v273
      %399 = vmatprep.subr.mxu0 0.0
      %400 = vmatpush1.msra.mxu0 %v274
      %401 = vmatprep.subr.mxu0 0.0
      %402 = vmatpush1.msra.mxu0 %v275
      %403 = vmatprep.subr.mxu0 0.0
      %404 = vmatpush1.msra.mxu0 %v276
      %405 = vmatprep.subr.mxu0 0.0
      %406 = vmatpush1.msra.mxu0 %v277
      %407 = vmatprep.subr.mxu0 0.0
      %408 = vmatpush1.msra.mxu0 %v278
      %409 = vmatprep.subr.mxu0 0.0
      %410 = vmatpush1.msra.mxu0 %v279
      %411 = vmatprep.subr.mxu0 0.0
      %412 = vmatpush1.msra.mxu0 %v280
      %413 = vmatprep.subr.mxu0 0.0
      %414 = vmatpush1.msra.mxu0 %v281
      %415 = vmatprep.subr.mxu0 0.0
      %416 = vmatpush1.msra.mxu0 %v282
      %417 = vmatprep.subr.mxu0 0.0
      %418 = vmatpush1.msra.mxu0 0.0
      %419 = vmatprep.subr.mxu0 0.0
      %420 = vmatpush1.msra.mxu0 0.0
      %421 = vmatprep.subr.mxu0 0.0
      %422 = vmatpush1.msra.mxu0 0.0
      %423 = vmatprep.subr.mxu0 0.0
      %424 = vmatpush1.msra.mxu0 0.0
      %425 = vmatprep.subr.mxu0 0.0
      %426 = vmatpush1.msra.mxu0 0.0
      %427 = vmatprep.subr.mxu0 0.0
      %428 = vmatpush1.msra.mxu0 0.0
      %429 = vmatprep.subr.mxu0 0.0
      %430 = vmatpush1.msra.mxu0 0.0
      %431 = vmatprep.subr.mxu0 0.0
      %432 = vmatpush1.msra.mxu0 0.0
      %433 = vmatprep.subr.mxu0 0.0
      %434 = vmatpush1.msra.mxu0 0.0
      %435 = vmatprep.subr.mxu0 0.0
      %436 = vmatpush1.msra.mxu0 0.0
      %437 = vmatprep.subr.mxu0 0.0
      %438 = vmatpush1.msra.mxu0 0.0
      %439 = vmatprep.subr.mxu0 0.0
      %440 = vmatpush1.msra.mxu0 0.0
      %441 = vmatprep.subr.mxu0 0.0
      %442 = vmatpush1.msra.mxu0 0.0
      %443 = vmatprep.subr.mxu0 0.0
      %444 = vmatpush1.msra.mxu0 0.0
      %445 = vmatprep.subr.mxu0 0.0
      %446 = vmatpush1.msra.mxu0 0.0
      %447 = vmatprep.subr.mxu0 0.0
      %448 = vmatpush1.msra.mxu0 0.0
      %449 = vmatprep.mubr.f32.mxu0 0.0
      %450 = vmatmul.mubr.f32.gmra.mrb[0].mxu0 %v265
      %v451 = vpop.f32.mrb[0].mxu0
      %v452 = vadd.f32 %v377, %v451
      %v453 = vpop.f32.mrb[0].mxu0
      %454 = vmatprep.mubr.f32.mxu0 0.0
      %455 = vmatmul.mubr.f32.gmra.mrb[0].mxu0 %v261
      %v456 = vpop.f32.mrb[0].mxu0
      %v457 = vadd.f32 %v382, %v456
      %v458 = vpop.f32.mrb[0].mxu0
      %459 = vdwg.mxu0
      %s460 = scalar_lea.vmem %s3, 256
      %v461 = vld [vmem:[%s460] sm:$0xff]
      %v462 = vld [vmem:[%s460 + $0x8] sm:$0xff]
      %v463 = vld [vmem:[%s460 + $0x10] sm:$0xff]
      %v464 = vld [vmem:[%s460 + $0x18] sm:$0xff]
      %v465 = vld [vmem:[%s460 + $0x20] sm:$0xff]
      %v466 = vld [vmem:[%s460 + $0x28] sm:$0xff]
      %v467 = vld [vmem:[%s460 + $0x30] sm:$0xff]
      %v468 = vld [vmem:[%s460 + $0x38] sm:$0xff]
      %v469 = vld [vmem:[%s460 + $0x40] sm:$0xff]
      %v470 = vld [vmem:[%s460 + $0x48] sm:$0xff]
      %v471 = vld [vmem:[%s460 + $0x50] sm:$0xff]
      %v472 = vld [vmem:[%s460 + $0x58] sm:$0xff]
      %v473 = vld [vmem:[%s460 + $0x60] sm:$0xff]
      %v474 = vld [vmem:[%s460 + $0x68] sm:$0xff]
      %v475 = vld [vmem:[%s460 + $0x70] sm:$0xff]
      %v476 = vld [vmem:[%s460 + $0x78] sm:$0xff]
      %vm477 = vcmask 1045504
      %v478 = vrot.slane %v265, 2
      %v479 = vrot.slane %v261, 2
      %v480 = vsel %vm477, %v478, %v479
      %v481 = vrot.slane %v266, 2
      %v482 = vsel %vm477, %v479, %v481
      %485 = vmatprep.subr.mxu0 0.0
      %486 = vmatpush1.msra.mxu0 %v461
      %487 = vmatprep.subr.mxu0 0.0
      %488 = vmatpush1.msra.mxu0 %v462
      %489 = vmatprep.subr.mxu0 0.0
      %490 = vmatpush1.msra.mxu0 %v463
      %491 = vmatprep.subr.mxu0 0.0
      %492 = vmatpush1.msra.mxu0 %v464
      %493 = vmatprep.subr.mxu0 0.0
      %494 = vmatpush1.msra.mxu0 %v465
      %495 = vmatprep.subr.mxu0 0.0
      %496 = vmatpush1.msra.mxu0 %v466
      %497 = vmatprep.subr.mxu0 0.0
      %498 = vmatpush1.msra.mxu0 %v467
      %499 = vmatprep.subr.mxu0 0.0
      %500 = vmatpush1.msra.mxu0 %v468
      %501 = vmatprep.subr.mxu0 0.0
      %502 = vmatpush1.msra.mxu0 %v469
      %503 = vmatprep.subr.mxu0 0.0
      %504 = vmatpush1.msra.mxu0 %v470
      %505 = vmatprep.subr.mxu0 0.0
      %506 = vmatpush1.msra.mxu0 %v471
      %507 = vmatprep.subr.mxu0 0.0
      %508 = vmatpush1.msra.mxu0 %v472
      %509 = vmatprep.subr.mxu0 0.0
      %510 = vmatpush1.msra.mxu0 %v473
      %511 = vmatprep.subr.mxu0 0.0
      %512 = vmatpush1.msra.mxu0 %v474
      %513 = vmatprep.subr.mxu0 0.0
      %514 = vmatpush1.msra.mxu0 %v475
      %515 = vmatprep.subr.mxu0 0.0
      %516 = vmatpush1.msra.mxu0 %v476
      %517 = vmatprep.subr.mxu0 0.0
      %518 = vmatpush1.msra.mxu0 0.0
      %519 = vmatprep.subr.mxu0 0.0
      %520 = vmatpush1.msra.mxu0 0.0
      %521 = vmatprep.subr.mxu0 0.0
      %522 = vmatpush1.msra.mxu0 0.0
      %523 = vmatprep.subr.mxu0 0.0
      %524 = vmatpush1.msra.mxu0 0.0
      %525 = vmatprep.subr.mxu0 0.0
      %526 = vmatpush1.msra.mxu0 0.0
      %527 = vmatprep.subr.mxu0 0.0
      %528 = vmatpush1.msra.mxu0 0.0
      %529 = vmatprep.subr.mxu0 0.0
      %530 = vmatpush1.msra.mxu0 0.0
      %531 = vmatprep.subr.mxu0 0.0
      %532 = vmatpush1.msra.mxu0 0.0
      %533 = vmatprep.subr.mxu0 0.0
      %534 = vmatpush1.msra.mxu0 0.0
      %535 = vmatprep.subr.mxu0 0.0
      %536 = vmatpush1.msra.mxu0 0.0
      %537 = vmatprep.subr.mxu0 0.0
      %538 = vmatpush1.msra.mxu0 0.0
      %539 = vmatprep.subr.mxu0 0.0
      %540 = vmatpush1.msra.mxu0 0.0
      %541 = vmatprep.subr.mxu0 0.0
      %542 = vmatpush1.msra.mxu0 0.0
      %543 = vmatprep.subr.mxu0 0.0
      %544 = vmatpush1.msra.mxu0 0.0
      %545 = vmatprep.subr.mxu0 0.0
      %546 = vmatpush1.msra.mxu0 0.0
      %547 = vmatprep.subr.mxu0 0.0
      %548 = vmatpush1.msra.mxu0 0.0
      %549 = vmatprep.mubr.f32.mxu0 0.0
      %550 = vmatmul.mubr.f32.gmra.mrb[0].mxu0 %v480
      %v551 = vpop.f32.mrb[0].mxu0
      %v552 = vadd.f32 0.0, %v551
      %v553 = vpop.f32.mrb[0].mxu0
      %554 = vmatprep.mubr.f32.mxu0 0.0
      %555 = vmatmul.mubr.f32.gmra.mrb[0].mxu0 %v482
      %v556 = vpop.f32.mrb[0].mxu0
      %v557 = vadd.f32 0.0, %v556
      %v558 = vpop.f32.mrb[0].mxu0
      %559 = vdwg.mxu0
      %v560 = vadd.f32 %v452, %v552
      %v561 = vadd.f32 %v457, %v557
      %vm562 = vcmask 523264
      %563 = vst.msk [vmem:[%s231] sm:$0xff] %vm562, %v560
      %564 = vst.msk [vmem:[%s231 + $0x8] sm:$0xff] %vm562, %v561
      %v565 = vsel %vm562, %v560, 0.0
      %v566 = vsel %vm562, %v561, 0.0
      %v567 = vadd.f32 %v565, %v566
      %v568 = vrot.slane %v567, 4
      %v569 = vadd.f32 %v567, %v568
      %v570 = vrot.slane %v569, 2
      %v571 = vadd.f32 %v569, %v570
      %v572 = vrot.slane %v571, 1
      %v573 = vadd.f32 %v571, %v572
      %v574 = vmul.f32 %v560, %v560
      %v575 = vmul.f32 %v561, %v561
      %v576 = vsel %vm562, %v574, 0.0
      %v577 = vsel %vm562, %v575, 0.0
      %v578 = vadd.f32 %v576, %v577
      %v579 = vrot.slane %v578, 4
      %v580 = vadd.f32 %v578, %v579
      %v581 = vrot.slane %v580, 2
      %v582 = vadd.f32 %v580, %v581
      %v583 = vrot.slane %v582, 1
      %v584 = vadd.f32 %v582, %v583
      %v585 = vsel %vm258, %v573, %v584
      %vm586 = vcmask 517120
      %587 = vst.msk [vmem:[%s235] sm:$0x3] %vm586, %v585
      %p588 = scmp.lt.s32.totalorder %s17, 1
      %s589 = scalar_select %p588, %s17, 1
      %s590 = smul.addr %s589, 2
      %s591 = smul.addr %s590, 8
      %s592 = scalar_lea.vmem %s4, %s591
      %p593 = scmp.lt.s32.totalorder %s17, 1
      %s594 = scalar_select %p593, %s17, 1
      %s595 = smul.addr %s594, 2
      %s596 = scalar_lea.vmem %s5, %s595
      // Predicated region
      $region37: #{conv_block_forward.5} parent=35 // pred_check
        %p597 = pneg %p124
      $region38: #{conv_block_forward.5} parent=35 // pred_check_branch
        %599 = sbr.rel (%p597) target = $region40
      $region39: #{conv_block_forward.5} parent=35 // pred_region
        _
      $region40: #{conv_block_forward.5} parent=35 // pred_fallthru
        _
      // Predicated region
      $region41: #{conv_block_forward.5} parent=35 // pred_check
        %p600 = pneg %p150
      $region42: #{conv_block_forward.5} parent=35 // pred_check_branch
        %602 = sbr.rel (%p600) target = $region44
      $region43: #{conv_block_forward.5} parent=35 // pred_region
        _
      $region44: #{conv_block_forward.5} parent=35 // pred_fallthru
        _
    $region36: #{conv_block_forward.5} parent=5 // pred_fallthru
      _
    %p603 = scmp.le.s32.totalorder 2, %s12
    // Predicated region
    $region45: #{conv_block_forward.5} parent=5 // pred_check
      %p604 = pneg %p603
    $region46: #{conv_block_forward.5} parent=5 // pred_check_branch
      %606 = sbr.rel (%p604) target = $region48
    $region47: #{conv_block_forward.5} parent=5 // pred_region
      %s607 = ssub.s32 %s12, 2
      // Predicated region
      $region49: #{conv_block_forward.5} parent=47 // pred_check
        %p608 = pneg %p130
      $region50: #{conv_block_forward.5} parent=47 // pred_check_branch
        %610 = sbr.rel (%p608) target = $region52
      $region51: #{conv_block_forward.5} parent=47 // pred_region
        %p611 = scmp.lt.s32.totalorder %s18, 1
        %s612 = scalar_select %p611, %s18, 1
        %s613 = smul.addr %s612, 2
        %s614 = smul.addr %s613, 8
        %s615 = scalar_lea.vmem %s4, %s614
      $region52: #{conv_block_forward.5} parent=47 // pred_fallthru
        _
      // Predicated region
      $region53: #{conv_block_forward.5} parent=47 // pred_check
        %p616 = pneg %p156
      $region54: #{conv_block_forward.5} parent=47 // pred_check_branch
        %618 = sbr.rel (%p616) target = $region56
      $region55: #{conv_block_forward.5} parent=47 // pred_region
        %p619 = scmp.lt.s32.totalorder %s18, 1
        %s620 = scalar_select %p619, %s18, 1
        %s621 = smul.addr %s620, 2
        %s622 = scalar_lea.vmem %s5, %s621
      $region56: #{conv_block_forward.5} parent=47 // pred_fallthru
        _
    $region48: #{conv_block_forward.5} parent=5 // pred_fallthru
      _
  $region6: #{conv_block_forward.5} parent=0 // loop_footer
    %s16 = sadd.s32 1, %s12
  $region7: #{conv_block_forward.5} parent=0 // loop_footer_branch
    %11 = sbr.rel target = $region3
  $region8: #{conv_block_forward.5} parent=0 // loop_exit
    _

</llo_original>
